<compile_context>
chip_gen: v6e
topology: v6e:2x2x1
jax: 0.10.0
libtpu: 0.0.40
codegen_flags: <defaults>
</compile_context>

<pallas_src>
import functools
import math

import jax
import jax.numpy as jnp
from jax import lax
from jax.experimental import pallas as pl
from jax.experimental.pallas import tpu as pltpu


def mhsa_kernel(x_ref, wq_ref, wk_ref, wv_ref, wo_ref, o_ref, acc_ref, *, scale):
    h = pl.program_id(1)

    x = x_ref[0]  # (S, D) bf16, resident across the head loop for this batch row

    # Per-head QKV projections (MXU, f32 accumulate).
    q = jnp.dot(x, wq_ref[0], preferred_element_type=jnp.float32)  # (S, Kd)
    k = jnp.dot(x, wk_ref[0], preferred_element_type=jnp.float32)  # (S, Kd)
    v = jnp.dot(x, wv_ref[0], preferred_element_type=jnp.float32)  # (S, Kd)

    # Scaled scores (S_q, S_k): contract the key_dim axes (q @ k^T).
    scores = lax.dot_general(
        q.astype(jnp.bfloat16), k.astype(jnp.bfloat16),
        (((1,), (1,)), ((), ())),
        preferred_element_type=jnp.float32) * scale

    # Reference module applies softmax over torch dim=1, i.e. the *query* axis
    # of the (S_q, S_k) score matrix -> axis 0 here. Stable softmax in f32,
    # reciprocal on the EUP.
    m = jnp.max(scores, axis=0, keepdims=True)
    e = jnp.exp(scores - m)
    p = e * pl.reciprocal(jnp.sum(e, axis=0, keepdims=True), approx=True)

    # Weighted values (S, Kd), then this head's slab of the output projection.
    wv = jnp.dot(p.astype(jnp.bfloat16), v.astype(jnp.bfloat16),
                 preferred_element_type=jnp.float32)
    contrib = jnp.dot(wv.astype(jnp.bfloat16), wo_ref[0],
                      preferred_element_type=jnp.float32)  # (S, D)

    @pl.when(h == 0)
    def _():
        acc_ref[...] = jnp.zeros_like(acc_ref)

    acc_ref[...] += contrib

    @pl.when(h == pl.num_programs(1) - 1)
    def _():
        o_ref[0] = acc_ref[...].astype(o_ref.dtype)


def multi_head_self_attention(x, wq, wk, wv, wo):
    """x: (B, S, D); wq/wk/wv: (H, D, Kd); wo: (H*Kd, D) with D == H*Kd."""
    B, S, D = x.shape
    H, _, Kd = wq.shape
    assert D == H * Kd

    # bf16 at the HBM boundary (memory-bound path); f32 accumulation in-kernel.
    xb = x.astype(jnp.bfloat16)
    wqb = wq.astype(jnp.bfloat16)
    wkb = wk.astype(jnp.bfloat16)
    wvb = wv.astype(jnp.bfloat16)
    wob = wo.reshape(H, Kd, D).astype(jnp.bfloat16)  # per-head output-proj slab

    kernel = functools.partial(mhsa_kernel, scale=1.0 / math.sqrt(Kd))

    return pl.pallas_call(
        kernel,
        out_shape=jax.ShapeDtypeStruct((B, S, D), jnp.float32),
        grid=(B, H),
        in_specs=[
            pl.BlockSpec((1, S, D), lambda b, h: (b, 0, 0)),   # x (reused over h)
            pl.BlockSpec((1, D, Kd), lambda b, h: (h, 0, 0)),  # Wq per head
            pl.BlockSpec((1, D, Kd), lambda b, h: (h, 0, 0)),  # Wk per head
            pl.BlockSpec((1, D, Kd), lambda b, h: (h, 0, 0)),  # Wv per head
            pl.BlockSpec((1, Kd, D), lambda b, h: (h, 0, 0)),  # Wo slab per head
        ],
        out_specs=pl.BlockSpec((1, S, D), lambda b, h: (b, 0, 0)),
        scratch_shapes=[pltpu.VMEM((S, D), jnp.float32)],
        compiler_params=pltpu.CompilerParams(
            dimension_semantics=("parallel", "arbitrary")),
    )(xb, wqb, wkb, wvb, wob)


def reference_mhsa(x, wq, wk, wv, wo, key_dim):
    """Pure-JAX replica of the PyTorch forward (f32 math)."""
    B, S, D = x.shape
    H = wq.shape[0]
    q = jnp.einsum("bsd,hdc->bhsc", x, wq)
    k = jnp.einsum("bsd,hdc->bhsc", x, wk)
    v = jnp.einsum("bsd,hdc->bhsc", x, wv)
    scores = jnp.einsum("bhqc,bhkc->bhqk", q, k) / math.sqrt(key_dim)
    p = jax.nn.softmax(scores, axis=2)  # torch F.softmax(..., dim=1) per head
    z = jnp.einsum("bhqk,bhkc->bhqc", p, v)
    z = jnp.transpose(z, (0, 2, 1, 3)).reshape(B, S, H * key_dim)
    return z @ wo


if __name__ == "__main__":
    # Small shapes consistent with the module (embedding_dim % num_heads == 0),
    # picked lane-friendly: B=2, S=128, D=256, heads=2, key_dim=128.
    B, S, D, H = 2, 128, 256, 2
    Kd = D // H

    key = jax.random.PRNGKey(0)
    kx, kq, kk, kv, ko = jax.random.split(key, 5)
    x = jax.random.normal(kx, (B, S, D), jnp.float32)
    # The module initializes weights with torch.randn; the forward semantics are
    # init-agnostic, so the self-test scales them by 1/sqrt(D) purely to keep
    # the softmax logits unsaturated for a meaningful numerical comparison.
    w_scale = 1.0 / math.sqrt(D)
    wq = jax.random.normal(kq, (H, D, Kd), jnp.float32) * w_scale
    wk = jax.random.normal(kk, (H, D, Kd), jnp.float32) * w_scale
    wv = jax.random.normal(kv, (H, D, Kd), jnp.float32) * w_scale
    wo = jax.random.normal(ko, (D, D), jnp.float32) * w_scale

    out = multi_head_self_attention(x, wq, wk, wv, wo)
    out = jax.block_until_ready(out)

    # Reference in f32 on the same bf16-quantized inputs the kernel consumes;
    # the remaining delta comes from bf16 MXU operands inside the kernel.
    q32 = lambda a: a.astype(jnp.bfloat16).astype(jnp.float32)
    ref = reference_mhsa(q32(x), q32(wq), q32(wk), q32(wv), q32(wo), Kd)

    assert out.shape == (B, S, D)
    assert jnp.allclose(out, ref, atol=5e-2, rtol=5e-2), float(
        jnp.max(jnp.abs(out - ref)))

    print("KERNEL_OK")
</pallas_src>

<mosaic_0001>
module attributes {stable_mosaic.version = 11 : i64} {
  func.func @mhsa_kernel(%arg0: i32, %arg1: i32, %arg2: memref<1x128x256xbf16, #tpu.memory_space<vmem>>, %arg3: memref<1x256x128xbf16, #tpu.memory_space<vmem>>, %arg4: memref<1x256x128xbf16, #tpu.memory_space<vmem>>, %arg5: memref<1x256x128xbf16, #tpu.memory_space<vmem>>, %arg6: memref<1x128x256xbf16, #tpu.memory_space<vmem>>, %arg7: memref<1x128x256xf32, #tpu.memory_space<vmem>>, %arg8: memref<128x256xf32, #tpu.memory_space<vmem>>) attributes {dimension_semantics = [#tpu.dimension_semantics<parallel>, #tpu.dimension_semantics<arbitrary>], iteration_bounds = array<i64: 2, 2>, scalar_prefetch = 0 : i64, scratch_operands = 1 : i64, tpu.core_type = #tpu.core_type<tc>, window_params = [{transform_indices = @transform_0, window_bounds = array<i64: 1, 128, 256>}, {transform_indices = @transform_1, window_bounds = array<i64: 1, 256, 128>}, {transform_indices = @transform_2, window_bounds = array<i64: 1, 256, 128>}, {transform_indices = @transform_3, window_bounds = array<i64: 1, 256, 128>}, {transform_indices = @transform_4, window_bounds = array<i64: 1, 128, 256>}, {transform_indices = @transform_5, window_bounds = array<i64: 1, 128, 256>}]} {
    %c0 = arith.constant 0 : index
    %c0_0 = arith.constant 0 : index
    %c0_1 = arith.constant 0 : index
    %0 = vector.load %arg2[%c0, %c0_0, %c0_1] : memref<1x128x256xbf16, #tpu.memory_space<vmem>>, vector<1x128x256xbf16>
    %1 = vector.shape_cast %0 : vector<1x128x256xbf16> to vector<128x256xbf16>
    %c0_2 = arith.constant 0 : index
    %c0_3 = arith.constant 0 : index
    %c0_4 = arith.constant 0 : index
    %2 = vector.load %arg3[%c0_2, %c0_3, %c0_4] : memref<1x256x128xbf16, #tpu.memory_space<vmem>>, vector<1x256x128xbf16>
    %3 = vector.shape_cast %2 : vector<1x256x128xbf16> to vector<256x128xbf16>
    %cst = arith.constant dense<0.000000e+00> : vector<128x128xf32>
    %4 = tpu.matmul %1, %3, %cst {dimension_numbers = #tpu.dot_dimension_numbers<[1], [0], [0], [1], [0, 0, 1, 1], [], []>} : vector<128x256xbf16>, vector<256x128xbf16>, vector<128x128xf32> -> vector<128x128xf32>
    %c0_5 = arith.constant 0 : index
    %c0_6 = arith.constant 0 : index
    %c0_7 = arith.constant 0 : index
    %5 = vector.load %arg4[%c0_5, %c0_6, %c0_7] : memref<1x256x128xbf16, #tpu.memory_space<vmem>>, vector<1x256x128xbf16>
    %6 = vector.shape_cast %5 : vector<1x256x128xbf16> to vector<256x128xbf16>
    %cst_8 = arith.constant dense<0.000000e+00> : vector<128x128xf32>
    %7 = tpu.matmul %1, %6, %cst_8 {dimension_numbers = #tpu.dot_dimension_numbers<[1], [0], [0], [1], [0, 0, 1, 1], [], []>} : vector<128x256xbf16>, vector<256x128xbf16>, vector<128x128xf32> -> vector<128x128xf32>
    %c0_9 = arith.constant 0 : index
    %c0_10 = arith.constant 0 : index
    %c0_11 = arith.constant 0 : index
    %8 = vector.load %arg5[%c0_9, %c0_10, %c0_11] : memref<1x256x128xbf16, #tpu.memory_space<vmem>>, vector<1x256x128xbf16>
    %9 = vector.shape_cast %8 : vector<1x256x128xbf16> to vector<256x128xbf16>
    %cst_12 = arith.constant dense<0.000000e+00> : vector<128x128xf32>
    %10 = tpu.matmul %1, %9, %cst_12 {dimension_numbers = #tpu.dot_dimension_numbers<[1], [0], [0], [1], [0, 0, 1, 1], [], []>} : vector<128x256xbf16>, vector<256x128xbf16>, vector<128x128xf32> -> vector<128x128xf32>
    %11 = arith.truncf %4 : vector<128x128xf32> to vector<128x128xbf16>
    %12 = arith.truncf %7 : vector<128x128xf32> to vector<128x128xbf16>
    %cst_13 = arith.constant dense<0.000000e+00> : vector<128x128xf32>
    %13 = tpu.matmul %11, %12, %cst_13 {dimension_numbers = #tpu.dot_dimension_numbers<[1], [1], [0], [0], [0, 0, 1, 0], [], []>} : vector<128x128xbf16>, vector<128x128xbf16>, vector<128x128xf32> -> vector<128x128xf32>
    %cst_14 = arith.constant 0.0883883461 : f32
    %14 = vector.broadcast %cst_14 : f32 to vector<128x128xf32>
    %15 = arith.mulf %13, %14 : vector<128x128xf32>
    %cst_15 = arith.constant dense<0xFF800000> : vector<128xf32>
    %16 = vector.multi_reduction <maximumf>, %15, %cst_15 [0] : vector<128x128xf32> to vector<128xf32>
    %17 = vector.shape_cast %16 : vector<128xf32> to vector<1x128xf32>
    %18 = vector.broadcast %17 : vector<1x128xf32> to vector<128x128xf32>
    %19 = arith.subf %15, %18 : vector<128x128xf32>
    %20 = math.exp %19 : vector<128x128xf32>
    %cst_16 = arith.constant dense<0.000000e+00> : vector<128xf32>
    %21 = vector.multi_reduction <add>, %20, %cst_16 [0] : vector<128x128xf32> to vector<128xf32>
    %22 = vector.shape_cast %21 : vector<128xf32> to vector<1x128xf32>
    %23 = tpu.reciprocal %22 {approx = true} : vector<1x128xf32> -> vector<1x128xf32>
    %24 = vector.broadcast %23 : vector<1x128xf32> to vector<128x128xf32>
    %25 = arith.mulf %20, %24 : vector<128x128xf32>
    %26 = arith.truncf %25 : vector<128x128xf32> to vector<128x128xbf16>
    %27 = arith.truncf %10 : vector<128x128xf32> to vector<128x128xbf16>
    %cst_17 = arith.constant dense<0.000000e+00> : vector<128x128xf32>
    %28 = tpu.matmul %26, %27, %cst_17 {dimension_numbers = #tpu.dot_dimension_numbers<[1], [0], [0], [1], [0, 0, 1, 1], [], []>} : vector<128x128xbf16>, vector<128x128xbf16>, vector<128x128xf32> -> vector<128x128xf32>
    %29 = arith.truncf %28 : vector<128x128xf32> to vector<128x128xbf16>
    %c0_18 = arith.constant 0 : index
    %c0_19 = arith.constant 0 : index
    %c0_20 = arith.constant 0 : index
    %30 = vector.load %arg6[%c0_18, %c0_19, %c0_20] : memref<1x128x256xbf16, #tpu.memory_space<vmem>>, vector<1x128x256xbf16>
    %31 = vector.shape_cast %30 : vector<1x128x256xbf16> to vector<128x256xbf16>
    %cst_21 = arith.constant dense<0.000000e+00> : vector<128x256xf32>
    %32 = tpu.matmul %29, %31, %cst_21 {dimension_numbers = #tpu.dot_dimension_numbers<[1], [0], [0], [1], [0, 0, 1, 1], [], []>} : vector<128x128xbf16>, vector<128x256xbf16>, vector<128x256xf32> -> vector<128x256xf32>
    %c0_i32 = arith.constant 0 : i32
    %33 = arith.cmpi eq, %arg1, %c0_i32 : i32
    %34 = arith.extui %33 : i1 to i32
    %c0_i32_22 = arith.constant 0 : i32
    %35 = arith.cmpi ne, %34, %c0_i32_22 : i32
    scf.if %35 {
      %cst_28 = arith.constant 0.000000e+00 : f32
      %42 = vector.broadcast %cst_28 : f32 to vector<128x256xf32>
      %c0_29 = arith.constant 0 : index
      %c0_30 = arith.constant 0 : index
      %43 = vector.load %arg8[%c0_29, %c0_30] : memref<128x256xf32, #tpu.memory_space<vmem>>, vector<128x256xf32>
      tpu.vector_store %arg8[%c0_29, %c0_30], %42 {strides = array<i32>} : memref<128x256xf32, #tpu.memory_space<vmem>>, vector<128x256xf32>,
    } else {
    }
    %c0_23 = arith.constant 0 : index
    %c0_24 = arith.constant 0 : index
    %36 = vector.load %arg8[%c0_23, %c0_24] : memref<128x256xf32, #tpu.memory_space<vmem>>, vector<128x256xf32>
    %37 = arith.addf %36, %32 : vector<128x256xf32>
    %c0_25 = arith.constant 0 : index
    %c0_26 = arith.constant 0 : index
    %38 = vector.load %arg8[%c0_25, %c0_26] : memref<128x256xf32, #tpu.memory_space<vmem>>, vector<128x256xf32>
    tpu.vector_store %arg8[%c0_25, %c0_26], %37 {strides = array<i32>} : memref<128x256xf32, #tpu.memory_space<vmem>>, vector<128x256xf32>,
    %c1_i32 = arith.constant 1 : i32
    %39 = arith.cmpi eq, %arg1, %c1_i32 : i32
    %40 = arith.extui %39 : i1 to i32
    %c0_i32_27 = arith.constant 0 : i32
    %41 = arith.cmpi ne, %40, %c0_i32_27 : i32
    scf.if %41 {
      %c0_28 = arith.constant 0 : index
      %c0_29 = arith.constant 0 : index
      %42 = vector.load %arg8[%c0_28, %c0_29] : memref<128x256xf32, #tpu.memory_space<vmem>>, vector<128x256xf32>
      %c0_30 = arith.constant 0 : index
      %c0_31 = arith.constant 0 : index
      %c0_32 = arith.constant 0 : index
      %43 = vector.load %arg7[%c0_30, %c0_31, %c0_32] : memref<1x128x256xf32, #tpu.memory_space<vmem>>, vector<1x128x256xf32>
      %44 = vector.shape_cast %43 : vector<1x128x256xf32> to vector<128x256xf32>
      %45 = vector.shape_cast %42 : vector<128x256xf32> to vector<1x128x256xf32>
      tpu.vector_store %arg7[%c0_30, %c0_31, %c0_32], %45 {strides = array<i32>} : memref<1x128x256xf32, #tpu.memory_space<vmem>>, vector<1x128x256xf32>,
    } else {
    }
    return
  }
  func.func @transform_0(%arg0: i32, %arg1: i32) -> (i32, i32, i32) {
    %c0_i32 = arith.constant 0 : i32
    %c0_i32_0 = arith.constant 0 : i32
    %c0_i32_1 = arith.constant 0 : i32
    return %arg0, %c0_i32, %c0_i32_0 : i32, i32, i32
  }
  func.func @transform_1(%arg0: i32, %arg1: i32) -> (i32, i32, i32) {
    %c0_i32 = arith.constant 0 : i32
    %c0_i32_0 = arith.constant 0 : i32
    %c0_i32_1 = arith.constant 0 : i32
    return %arg1, %c0_i32, %c0_i32_0 : i32, i32, i32
  }
  func.func @transform_2(%arg0: i32, %arg1: i32) -> (i32, i32, i32) {
    %c0_i32 = arith.constant 0 : i32
    %c0_i32_0 = arith.constant 0 : i32
    %c0_i32_1 = arith.constant 0 : i32
    return %arg1, %c0_i32, %c0_i32_0 : i32, i32, i32
  }
  func.func @transform_3(%arg0: i32, %arg1: i32) -> (i32, i32, i32) {
    %c0_i32 = arith.constant 0 : i32
    %c0_i32_0 = arith.constant 0 : i32
    %c0_i32_1 = arith.constant 0 : i32
    return %arg1, %c0_i32, %c0_i32_0 : i32, i32, i32
  }
  func.func @transform_4(%arg0: i32, %arg1: i32) -> (i32, i32, i32) {
    %c0_i32 = arith.constant 0 : i32
    %c0_i32_0 = arith.constant 0 : i32
    %c0_i32_1 = arith.constant 0 : i32
    return %arg1, %c0_i32, %c0_i32_0 : i32, i32, i32
  }
  func.func @transform_5(%arg0: i32, %arg1: i32) -> (i32, i32, i32) {
    %c0_i32 = arith.constant 0 : i32
    %c0_i32_0 = arith.constant 0 : i32
    %c0_i32_1 = arith.constant 0 : i32
    return %arg0, %c0_i32, %c0_i32_0 : i32, i32, i32
  }
}

</mosaic_0001>

<llo_original>
// kernel: tpu_custom_call.1
$region0: #{tpu_custom_call.1}
  #allocation0 [shape = 'u32[]', space=smem, size = 0x4, offset = 0x4, fixed_abs, tag = 'smem constant byte address 0x4 - core index']
  #allocation1 [shape = 'u32[144,128]{1,0:T(1,128)}', space=vmem, size = 0x12000, scoped, tag = 'internal scratch']
  #allocation2 [shape = 'f32[128,256]{1,0:T(8,128)}', space=vmem, size = 0x20000, scoped, tag = 'scratch operand']
  %s0 = inlined_call_operand.hbm [shape: bf16[2,128,256], index: 0, kind: input, shape index: {}]
  %s1 = inlined_call_operand.hbm [shape: bf16[2,256,128], index: 1, kind: input, shape index: {}]
  %s2 = inlined_call_operand.hbm [shape: bf16[2,256,128], index: 2, kind: input, shape index: {}]
  %s3 = inlined_call_operand.hbm [shape: bf16[2,256,128], index: 3, kind: input, shape index: {}]
  %s4 = inlined_call_operand.hbm [shape: bf16[2,128,256], index: 4, kind: input, shape index: {}]
  %s5 = inlined_call_operand.hbm [shape: f32[2,128,256], index: 5, kind: output, shape index: {}]
  %s6 = sld [smem:[#allocation0]]
  $region81: #{tpu_custom_call.1} parent=0
    _
  %s8 = ssub.s32 1, %s6
  %s9 = scalar_select 0, %s8, %s6
  $region1: #{tpu_custom_call.1} parent=0
    #allocation3 [shape = 'u8[131072]{0}', space=vmem, size = 0x20000, scoped, tag = 'input window, operand 0']
    #allocation4 [shape = 's32[2]{0}', space=sflag, size = 0x8, scoped, tag = 'scoped memory for tpu_custom_call.1']
    #allocation5 [shape = 's32[2]{0}', space=sflag, size = 0x8, scoped, tag = 'scoped memory for tpu_custom_call.1']
    #allocation6 [shape = 'u8[131072]{0}', space=vmem, size = 0x20000, scoped, tag = 'input window, operand 1']
    #allocation7 [shape = 's32[2]{0}', space=sflag, size = 0x8, scoped, tag = 'scoped memory for tpu_custom_call.1']
    #allocation8 [shape = 'u8[131072]{0}', space=vmem, size = 0x20000, scoped, tag = 'input window, operand 2']
    #allocation9 [shape = 'u8[131072]{0}', space=vmem, size = 0x20000, scoped, tag = 'input window, operand 3']
    #allocation10 [shape = 's32[2]{0}', space=sflag, size = 0x8, scoped, tag = 'scoped memory for tpu_custom_call.1']
    #allocation11 [shape = 'u8[131072]{0}', space=vmem, size = 0x20000, scoped, tag = 'input window, operand 4']
    #allocation12 [shape = 'u8[262144]{0}', space=vmem, size = 0x40000, scoped, tag = 'output window, operand 0']
    %10 = vsyncpa [#allocation4], 0
    %s11 = scalar_lea.sflag [#allocation4], 1
    %12 = vsyncpa %s11, 0
    %13 = vsyncpa [#allocation7], 0
    %s14 = scalar_lea.sflag [#allocation7], 1
    %15 = vsyncpa %s14, 0
    %16 = vsyncpa [#allocation10], 0
    %s17 = scalar_lea.sflag [#allocation10], 1
    %18 = vsyncpa %s17, 0
    %19 = vsyncpa [#allocation5], 0
    %s20 = scalar_lea.sflag [#allocation5], 1
    %21 = vsyncpa %s20, 0
    loop: start=0, step=1, limit=6
    $region2: #{tpu_custom_call.1} parent=1 // loop_pre_header
      _
    $region3: #{tpu_custom_call.1} parent=1 // loop_header
      %s23 = sphi 0, %s27
      %p24 = scmp.ge.s32.totalorder %s23, 6
      %s30 = sphi 0, %s42
      %s31 = sphi 0, %s38
      %s32 = sphi 0, %s30
      %s33 = sphi 0, %s31
      %s34 = sphi 0, %s32
      %s35 = sphi 0, %s33
      %s45 = sphi 0, %s47
      %s48 = sphi 0, %s45
      %s49 = sphi 0, %s48
      %s65 = sphi 0, %s49
      %s71 = sphi 0, %s73
      %s74 = sphi 0, %s71
      %s75 = sphi 0, %s74
      %s91 = sphi 0, %s75
      %s97 = sphi 0, %s99
      %s100 = sphi 0, %s97
      %s101 = sphi 0, %s100
      %s117 = sphi 0, %s101
      %s123 = sphi 0, %s125
      %s126 = sphi 0, %s123
      %s127 = sphi 0, %s126
      %s143 = sphi 0, %s127
      %s149 = sphi 0, %s151
      %s152 = sphi 0, %s149
      %s153 = sphi 0, %s152
      %s169 = sphi 0, %s153
      %s175 = sphi 0, %s177
      %s178 = sphi 0, %s175
      %s179 = sphi 0, %s178
      %s195 = sphi 0, %s179
    $region4: #{tpu_custom_call.1} parent=1 // loop_header_branch
      %26 = sbr.rel (%p24) target = $region8
    $region5: #{tpu_custom_call.1} parent=1 // loop_body
      %s28 = ssub.s32 %s23, 1
      %s29 = ssub.s32 %s23, 2
      %s36 = sadd.s32 1, %s31
      %p37 = scmp.ge.s32.totalorder %s36, 2
      %s38 = scalar_select %p37, 0, %s36
      %s39 = sadd.s32 1, %s30
      %s40 = scalar_select %p37, %s39, %s30
      %p41 = scmp.ge.s32.totalorder %s40, 2
      %s42 = scalar_select %p41, 0, %s40
      %s43 = ssub.s32 %s30, %s42
      %p44 = scmp.eq.s32.totalorder %s43, 0
      %s46 = sadd.s32 %s45, 1
      %s47 = scalar_select %p44, %s45, %s46
      %p50 = pneg %p44
      %p51 = scmp.eq.s32.totalorder %s23, 3
      %p52 = por %p50, %p51
      %p53 = scmp.ne.s32.totalorder %s45, %s48
      %p54 = scmp.eq.s32.totalorder %s23, 0
      %p55 = por %p53, %p54
      %p56 = scmp.ne.s32.totalorder %s45, %s48
      %p57 = scmp.eq.s32.totalorder %s28, 3
      %p58 = por %p56, %p57
      %p59 = scmp.ne.s32.totalorder %s48, %s49
      %p60 = scmp.eq.s32.totalorder %s28, 0
      %p61 = por %p59, %p60
      %p62 = scmp.ne.s32.totalorder %s48, %s49
      %p63 = scmp.eq.s32.totalorder %s29, 3
      %p64 = por %p62, %p63
      %p66 = scmp.ne.s32.totalorder %s49, %s65
      %p67 = scmp.eq.s32.totalorder %s29, 0
      %p68 = por %p66, %p67
      %s69 = ssub.s32 %s31, %s38
      %p70 = scmp.eq.s32.totalorder %s69, 0
      %s72 = sadd.s32 %s71, 1
      %s73 = scalar_select %p70, %s71, %s72
      %p76 = pneg %p70
      %p77 = scmp.eq.s32.totalorder %s23, 3
      %p78 = por %p76, %p77
      %p79 = scmp.ne.s32.totalorder %s71, %s74
      %p80 = scmp.eq.s32.totalorder %s23, 0
      %p81 = por %p79, %p80
      %p82 = scmp.ne.s32.totalorder %s71, %s74
      %p83 = scmp.eq.s32.totalorder %s28, 3
      %p84 = por %p82, %p83
      %p85 = scmp.ne.s32.totalorder %s74, %s75
      %p86 = scmp.eq.s32.totalorder %s28, 0
      %p87 = por %p85, %p86
      %p88 = scmp.ne.s32.totalorder %s74, %s75
      %p89 = scmp.eq.s32.totalorder %s29, 3
      %p90 = por %p88, %p89
      %p92 = scmp.ne.s32.totalorder %s75, %s91
      %p93 = scmp.eq.s32.totalorder %s29, 0
      %p94 = por %p92, %p93
      %s95 = ssub.s32 %s31, %s38
      %p96 = scmp.eq.s32.totalorder %s95, 0
      %s98 = sadd.s32 %s97, 1
      %s99 = scalar_select %p96, %s97, %s98
      %p102 = pneg %p96
      %p103 = scmp.eq.s32.totalorder %s23, 3
      %p104 = por %p102, %p103
      %p105 = scmp.ne.s32.totalorder %s97, %s100
      %p106 = scmp.eq.s32.totalorder %s23, 0
      %p107 = por %p105, %p106
      %p108 = scmp.ne.s32.totalorder %s97, %s100
      %p109 = scmp.eq.s32.totalorder %s28, 3
      %p110 = por %p108, %p109
      %p111 = scmp.ne.s32.totalorder %s100, %s101
      %p112 = scmp.eq.s32.totalorder %s28, 0
      %p113 = por %p111, %p112
      %p114 = scmp.ne.s32.totalorder %s100, %s101
      %p115 = scmp.eq.s32.totalorder %s29, 3
      %p116 = por %p114, %p115
      %p118 = scmp.ne.s32.totalorder %s101, %s117
      %p119 = scmp.eq.s32.totalorder %s29, 0
      %p120 = por %p118, %p119
      %s121 = ssub.s32 %s31, %s38
      %p122 = scmp.eq.s32.totalorder %s121, 0
      %s124 = sadd.s32 %s123, 1
      %s125 = scalar_select %p122, %s123, %s124
      %p128 = pneg %p122
      %p129 = scmp.eq.s32.totalorder %s23, 3
      %p130 = por %p128, %p129
      %p131 = scmp.ne.s32.totalorder %s123, %s126
      %p132 = scmp.eq.s32.totalorder %s23, 0
      %p133 = por %p131, %p132
      %p134 = scmp.ne.s32.totalorder %s123, %s126
      %p135 = scmp.eq.s32.totalorder %s28, 3
      %p136 = por %p134, %p135
      %p137 = scmp.ne.s32.totalorder %s126, %s127
      %p138 = scmp.eq.s32.totalorder %s28, 0
      %p139 = por %p137, %p138
      %p140 = scmp.ne.s32.totalorder %s126, %s127
      %p141 = scmp.eq.s32.totalorder %s29, 3
      %p142 = por %p140, %p141
      %p144 = scmp.ne.s32.totalorder %s127, %s143
      %p145 = scmp.eq.s32.totalorder %s29, 0
      %p146 = por %p144, %p145
      %s147 = ssub.s32 %s31, %s38
      %p148 = scmp.eq.s32.totalorder %s147, 0
      %s150 = sadd.s32 %s149, 1
      %s151 = scalar_select %p148, %s149, %s150
      %p154 = pneg %p148
      %p155 = scmp.eq.s32.totalorder %s23, 3
      %p156 = por %p154, %p155
      %p157 = scmp.ne.s32.totalorder %s149, %s152
      %p158 = scmp.eq.s32.totalorder %s23, 0
      %p159 = por %p157, %p158
      %p160 = scmp.ne.s32.totalorder %s149, %s152
      %p161 = scmp.eq.s32.totalorder %s28, 3
      %p162 = por %p160, %p161
      %p163 = scmp.ne.s32.totalorder %s152, %s153
      %p164 = scmp.eq.s32.totalorder %s28, 0
      %p165 = por %p163, %p164
      %p166 = scmp.ne.s32.totalorder %s152, %s153
      %p167 = scmp.eq.s32.totalorder %s29, 3
      %p168 = por %p166, %p167
      %p170 = scmp.ne.s32.totalorder %s153, %s169
      %p171 = scmp.eq.s32.totalorder %s29, 0
      %p172 = por %p170, %p171
      %s173 = ssub.s32 %s30, %s42
      %p174 = scmp.eq.s32.totalorder %s173, 0
      %s176 = sadd.s32 %s175, 1
      %s177 = scalar_select %p174, %s175, %s176
      %p180 = pneg %p174
      %p181 = scmp.eq.s32.totalorder %s23, 3
      %p182 = por %p180, %p181
      %p183 = scmp.ne.s32.totalorder %s175, %s178
      %p184 = scmp.eq.s32.totalorder %s23, 0
      %p185 = por %p183, %p184
      %p186 = scmp.ne.s32.totalorder %s175, %s178
      %p187 = scmp.eq.s32.totalorder %s28, 3
      %p188 = por %p186, %p187
      %p189 = scmp.ne.s32.totalorder %s178, %s179
      %p190 = scmp.eq.s32.totalorder %s28, 0
      %p191 = por %p189, %p190
      %p192 = scmp.ne.s32.totalorder %s178, %s179
      %p193 = scmp.eq.s32.totalorder %s29, 3
      %p194 = por %p192, %p193
      %p196 = scmp.ne.s32.totalorder %s179, %s195
      %p197 = scmp.eq.s32.totalorder %s29, 0
      %p198 = por %p196, %p197
      %p199 = scmp.le.s32.totalorder 1, %s23
      %p200 = scmp.lt.s32.totalorder %s23, 5
      %p201 = pnand %p199, %p200
      %p202 = pneg %p201
      // Predicated region
      $region9: #{tpu_custom_call.1} parent=5 // pred_check
        _
      $region10: #{tpu_custom_call.1} parent=5 // pred_check_branch
        %204 = sbr.rel (%p201) target = $region12
      $region11: #{tpu_custom_call.1} parent=5 // pred_region
        %s205 = ssub.s32 %s23, 1
      $region12: #{tpu_custom_call.1} parent=5 // pred_fallthru
        _
      %p206 = scmp.lt.s32.totalorder %s23, 4
      // Predicated region
      $region13: #{tpu_custom_call.1} parent=5 // pred_check
        %p207 = pneg %p206
      $region14: #{tpu_custom_call.1} parent=5 // pred_check_branch
        %209 = sbr.rel (%p207) target = $region16
      $region15: #{tpu_custom_call.1} parent=5 // pred_region
        // Predicated region
        $region17: #{tpu_custom_call.1} parent=15 // pred_check
          %p210 = pneg %p55
        $region18: #{tpu_custom_call.1} parent=15 // pred_check_branch
          %212 = sbr.rel (%p210) target = $region20
        $region19: #{tpu_custom_call.1} parent=15 // pred_region
          %s213 = sand.u32 %s45, 1
          %s214 = scalar_lea.sflag [#allocation4], %s213
          %s215 = sand.u32 %s45, 1
          %s216 = smul.addr %s215, 128
          %s217 = scalar_lea.vmem [#allocation3], %s216
          %s219 = ssub.s32 2048, 2048
          %220 = vsyncadd %s214, %s219
          %s221 = smul.addr %s30, 32
          %s222 = smul.addr %s221, 64
          %s223 = scalar_lea.hbm %s0, %s222
          %s224 = sshll.u32 %s217, 4
          %s225 = int_to_ptr.vmem [resolvable:$true] %s224
          %230 = dma.hbm_to_vmem [thread:$0]  %s223, 2048, %s225, %s214, 128, 128, 8
        $region20: #{tpu_custom_call.1} parent=15 // pred_fallthru
          _
        // Predicated region
        $region21: #{tpu_custom_call.1} parent=15 // pred_check
          %p231 = pneg %p81
        $region22: #{tpu_custom_call.1} parent=15 // pred_check_branch
          %233 = sbr.rel (%p231) target = $region24
        $region23: #{tpu_custom_call.1} parent=15 // pred_region
          %s234 = sand.u32 %s23, 1
          %s235 = scalar_lea.sflag [#allocation7], %s234
          %s236 = sand.u32 %s71, 1
          %s237 = smul.addr %s236, 128
          %s238 = scalar_lea.vmem [#allocation6], %s237
          %s240 = ssub.s32 2048, 2048
          %241 = vsyncadd %s235, %s240
          %s242 = smul.addr %s31, 32
          %s243 = smul.addr %s242, 64
          %s244 = scalar_lea.hbm %s1, %s243
          %s245 = sshll.u32 %s238, 4
          %s246 = int_to_ptr.vmem [resolvable:$true] %s245
          %251 = dma.hbm_to_vmem [thread:$0]  %s244, 2048, %s246, %s235, 64, 64, 4
        $region24: #{tpu_custom_call.1} parent=15 // pred_fallthru
          _
        // Predicated region
        $region25: #{tpu_custom_call.1} parent=15 // pred_check
          %p252 = pneg %p107
        $region26: #{tpu_custom_call.1} parent=15 // pred_check_branch
          %254 = sbr.rel (%p252) target = $region28
        $region27: #{tpu_custom_call.1} parent=15 // pred_region
          %s255 = sand.u32 %s23, 1
          %s256 = scalar_lea.sflag [#allocation7], %s255
          %s257 = sand.u32 %s97, 1
          %s258 = smul.addr %s257, 128
          %s259 = scalar_lea.vmem [#allocation8], %s258
          %s261 = ssub.s32 2048, 2048
          %262 = vsyncadd %s256, %s261
          %s263 = smul.addr %s31, 32
          %s264 = smul.addr %s263, 64
          %s265 = scalar_lea.hbm %s2, %s264
          %s266 = sshll.u32 %s259, 4
          %s267 = int_to_ptr.vmem [resolvable:$true] %s266
          %272 = dma.hbm_to_vmem [thread:$0]  %s265, 2048, %s267, %s256, 64, 64, 4
        $region28: #{tpu_custom_call.1} parent=15 // pred_fallthru
          _
        // Predicated region
        $region29: #{tpu_custom_call.1} parent=15 // pred_check
          %p273 = pneg %p133
        $region30: #{tpu_custom_call.1} parent=15 // pred_check_branch
          %275 = sbr.rel (%p273) target = $region32
        $region31: #{tpu_custom_call.1} parent=15 // pred_region
          %s276 = sand.u32 %s23, 1
          %s277 = scalar_lea.sflag [#allocation10], %s276
          %s278 = sand.u32 %s123, 1
          %s279 = smul.addr %s278, 128
          %s280 = scalar_lea.vmem [#allocation9], %s279
          %s282 = ssub.s32 2048, 2048
          %283 = vsyncadd %s277, %s282
          %s284 = smul.addr %s31, 32
          %s285 = smul.addr %s284, 64
          %s286 = scalar_lea.hbm %s3, %s285
          %s287 = sshll.u32 %s280, 4
          %s288 = int_to_ptr.vmem [resolvable:$true] %s287
          %293 = dma.hbm_to_vmem [thread:$0]  %s286, 2048, %s288, %s277, 64, 64, 4
        $region32: #{tpu_custom_call.1} parent=15 // pred_fallthru
          _
        // Predicated region
        $region33: #{tpu_custom_call.1} parent=15 // pred_check
          %p294 = pneg %p159
        $region34: #{tpu_custom_call.1} parent=15 // pred_check_branch
          %296 = sbr.rel (%p294) target = $region36
        $region35: #{tpu_custom_call.1} parent=15 // pred_region
          %s297 = sand.u32 %s23, 1
          %s298 = scalar_lea.sflag [#allocation10], %s297
          %s299 = sand.u32 %s149, 1
          %s300 = smul.addr %s299, 128
          %s301 = scalar_lea.vmem [#allocation11], %s300
          %s303 = ssub.s32 2048, 2048
          %304 = vsyncadd %s298, %s303
          %s305 = smul.addr %s31, 32
          %s306 = smul.addr %s305, 64
          %s307 = scalar_lea.hbm %s4, %s306
          %s308 = sshll.u32 %s301, 4
          %s309 = int_to_ptr.vmem [resolvable:$true] %s308
          %314 = dma.hbm_to_vmem [thread:$0]  %s307, 2048, %s309, %s298, 128, 128, 8
        $region36: #{tpu_custom_call.1} parent=15 // pred_fallthru
          _
      $region16: #{tpu_custom_call.1} parent=5 // pred_fallthru
        _
      %p315 = scmp.le.s32.totalorder 1, %s23
      %p316 = scmp.lt.s32.totalorder %s23, 5
      %p317 = pnand %p315, %p316
      %p318 = pneg %p317
      // Predicated region
      $region37: #{tpu_custom_call.1} parent=5 // pred_check
        _
      $region38: #{tpu_custom_call.1} parent=5 // pred_check_branch
        %320 = sbr.rel (%p317) target = $region40
      $region39: #{tpu_custom_call.1} parent=5 // pred_region
        %s321 = ssub.s32 %s23, 1
        %s322 = sand.u32 %s48, 1
        %s323 = scalar_lea.sflag [#allocation4], %s322
        %s324 = sand.u32 %s48, 1
        %s325 = smul.addr %s324, 128
        %s326 = scalar_lea.vmem [#allocation3], %s325
        // Predicated region
        $region41: #{tpu_custom_call.1} parent=39 // pred_check
          %p327 = pneg %p61
        $region42: #{tpu_custom_call.1} parent=39 // pred_check_branch
          %329 = sbr.rel (%p327) target = $region44
        $region43: #{tpu_custom_call.1} parent=39 // pred_region
          %330 = dma.done %s323, 2048
        $region44: #{tpu_custom_call.1} parent=39 // pred_fallthru
          _
        %s331 = sand.u32 %s28, 1
        %s332 = scalar_lea.sflag [#allocation7], %s331
        %s333 = sand.u32 %s74, 1
        %s334 = smul.addr %s333, 128
        %s335 = scalar_lea.vmem [#allocation6], %s334
        // Predicated region
        $region45: #{tpu_custom_call.1} parent=39 // pred_check
          %p336 = pneg %p87
        $region46: #{tpu_custom_call.1} parent=39 // pred_check_branch
          %338 = sbr.rel (%p336) target = $region48
        $region47: #{tpu_custom_call.1} parent=39 // pred_region
          %339 = dma.done %s332, 2048
        $region48: #{tpu_custom_call.1} parent=39 // pred_fallthru
          _
        %s340 = sand.u32 %s28, 1
        %s341 = scalar_lea.sflag [#allocation7], %s340
        %s342 = sand.u32 %s100, 1
        %s343 = smul.addr %s342, 128
        %s344 = scalar_lea.vmem [#allocation8], %s343
        // Predicated region
        $region49: #{tpu_custom_call.1} parent=39 // pred_check
          %p345 = pneg %p113
        $region50: #{tpu_custom_call.1} parent=39 // pred_check_branch
          %347 = sbr.rel (%p345) target = $region52
        $region51: #{tpu_custom_call.1} parent=39 // pred_region
          %348 = dma.done %s341, 2048
        $region52: #{tpu_custom_call.1} parent=39 // pred_fallthru
          _
        %s349 = sand.u32 %s28, 1
        %s350 = scalar_lea.sflag [#allocation10], %s349
        %s351 = sand.u32 %s126, 1
        %s352 = smul.addr %s351, 128
        %s353 = scalar_lea.vmem [#allocation9], %s352
        // Predicated region
        $region53: #{tpu_custom_call.1} parent=39 // pred_check
          %p354 = pneg %p139
        $region54: #{tpu_custom_call.1} parent=39 // pred_check_branch
          %356 = sbr.rel (%p354) target = $region56
        $region55: #{tpu_custom_call.1} parent=39 // pred_region
          %357 = dma.done %s350, 2048
        $region56: #{tpu_custom_call.1} parent=39 // pred_fallthru
          _
        %s358 = sand.u32 %s28, 1
        %s359 = scalar_lea.sflag [#allocation10], %s358
        %s360 = sand.u32 %s152, 1
        %s361 = smul.addr %s360, 128
        %s362 = scalar_lea.vmem [#allocation11], %s361
        // Predicated region
        $region57: #{tpu_custom_call.1} parent=39 // pred_check
          %p363 = pneg %p165
        $region58: #{tpu_custom_call.1} parent=39 // pred_check_branch
          %365 = sbr.rel (%p363) target = $region60
        $region59: #{tpu_custom_call.1} parent=39 // pred_region
          %366 = dma.done %s359, 2048
        $region60: #{tpu_custom_call.1} parent=39 // pred_fallthru
          _
        %s367 = sand.u32 %s48, 1
        %s368 = scalar_lea.sflag [#allocation4], %s367
        %s369 = sand.u32 %s48, 1
        %s370 = smul.addr %s369, 128
        %s371 = scalar_lea.vmem [#allocation3], %s370
        %p372 = pneg %p61
        %p373 = pneg %p58
        %s374 = sand.u32 %s28, 1
        %s375 = scalar_lea.sflag [#allocation7], %s374
        %s376 = sand.u32 %s74, 1
        %s377 = smul.addr %s376, 128
        %s378 = scalar_lea.vmem [#allocation6], %s377
        %p379 = pneg %p87
        %p380 = pneg %p84
        %s381 = sand.u32 %s28, 1
        %s382 = scalar_lea.sflag [#allocation7], %s381
        %s383 = sand.u32 %s100, 1
        %s384 = smul.addr %s383, 128
        %s385 = scalar_lea.vmem [#allocation8], %s384
        %p386 = pneg %p113
        %p387 = pneg %p110
        %s388 = sand.u32 %s28, 1
        %s389 = scalar_lea.sflag [#allocation10], %s388
        %s390 = sand.u32 %s126, 1
        %s391 = smul.addr %s390, 128
        %s392 = scalar_lea.vmem [#allocation9], %s391
        %p393 = pneg %p139
        %p394 = pneg %p136
        %s395 = sand.u32 %s28, 1
        %s396 = scalar_lea.sflag [#allocation10], %s395
        %s397 = sand.u32 %s152, 1
        %s398 = smul.addr %s397, 128
        %s399 = scalar_lea.vmem [#allocation11], %s398
        %p400 = pneg %p165
        %p401 = pneg %p162
        %p402 = pneg %p191
        %p403 = pneg %p188
        %s404 = sand.u32 %s178, 1
        %s405 = scalar_lea.sflag [#allocation5], %s404
        %s406 = sand.u32 %s178, 1
        %s407 = smul.addr %s406, 256
        %s408 = scalar_lea.vmem [#allocation12], %s407
        %v410 = vld [vmem:[%s326] sm:$0xff]
        %v411 = vld [vmem:[%s326 + $0x8] sm:$0xff]
        %v412 = vld [vmem:[%s326 + $0x10] sm:$0xff]
        %v413 = vld [vmem:[%s326 + $0x18] sm:$0xff]
        %v414 = vld [vmem:[%s326 + $0x20] sm:$0xff]
        %v415 = vld [vmem:[%s326 + $0x28] sm:$0xff]
        %v416 = vld [vmem:[%s326 + $0x30] sm:$0xff]
        %v417 = vld [vmem:[%s326 + $0x38] sm:$0xff]
        %v418 = vld [vmem:[%s326 + $0x40] sm:$0xff]
        %v419 = vld [vmem:[%s326 + $0x48] sm:$0xff]
        %v420 = vld [vmem:[%s326 + $0x50] sm:$0xff]
        %v421 = vld [vmem:[%s326 + $0x58] sm:$0xff]
        %v422 = vld [vmem:[%s326 + $0x60] sm:$0xff]
        %v423 = vld [vmem:[%s326 + $0x68] sm:$0xff]
        %v424 = vld [vmem:[%s326 + $0x70] sm:$0xff]
        %v425 = vld [vmem:[%s326 + $0x78] sm:$0xff]
        %v426 = vld [vmem:[%s335] sm:$0xf]
        %v427 = vld [vmem:[%s335 + $0x4] sm:$0xf]
        %v428 = vld [vmem:[%s335 + $0x8] sm:$0xf]
        %v429 = vld [vmem:[%s335 + $0xc] sm:$0xf]
        %v430 = vld [vmem:[%s335 + $0x10] sm:$0xf]
        %v431 = vld [vmem:[%s335 + $0x14] sm:$0xf]
        %v432 = vld [vmem:[%s335 + $0x18] sm:$0xf]
        %v433 = vld [vmem:[%s335 + $0x1c] sm:$0xf]
        %v434 = vld [vmem:[%s335 + $0x20] sm:$0xf]
        %v435 = vld [vmem:[%s335 + $0x24] sm:$0xf]
        %v436 = vld [vmem:[%s335 + $0x28] sm:$0xf]
        %v437 = vld [vmem:[%s335 + $0x2c] sm:$0xf]
        %v438 = vld [vmem:[%s335 + $0x30] sm:$0xf]
        %v439 = vld [vmem:[%s335 + $0x34] sm:$0xf]
        %v440 = vld [vmem:[%s335 + $0x38] sm:$0xf]
        %v441 = vld [vmem:[%s335 + $0x3c] sm:$0xf]
        %v442 = vld [vmem:[%s335 + $0x40] sm:$0xf]
        %v443 = vld [vmem:[%s335 + $0x44] sm:$0xf]
        %v444 = vld [vmem:[%s335 + $0x48] sm:$0xf]
        %v445 = vld [vmem:[%s335 + $0x4c] sm:$0xf]
        %v446 = vld [vmem:[%s335 + $0x50] sm:$0xf]
        %v447 = vld [vmem:[%s335 + $0x54] sm:$0xf]
        %v448 = vld [vmem:[%s335 + $0x58] sm:$0xf]
        %v449 = vld [vmem:[%s335 + $0x5c] sm:$0xf]
        %v450 = vld [vmem:[%s335 + $0x60] sm:$0xf]
        %v451 = vld [vmem:[%s335 + $0x64] sm:$0xf]
        %v452 = vld [vmem:[%s335 + $0x68] sm:$0xf]
        %v453 = vld [vmem:[%s335 + $0x6c] sm:$0xf]
        %v454 = vld [vmem:[%s335 + $0x70] sm:$0xf]
        %v455 = vld [vmem:[%s335 + $0x74] sm:$0xf]
        %v456 = vld [vmem:[%s335 + $0x78] sm:$0xf]
        %v457 = vld [vmem:[%s335 + $0x7c] sm:$0xf]
        %v474 = vunpack.c.l.b16 %v410
        %v475 = vunpack.c.h.b16 %v410
        %v476 = vunpack.c.l.b16 %v411
        %v477 = vunpack.c.h.b16 %v411
        %v478 = vunpack.c.l.b16 %v412
        %v479 = vunpack.c.h.b16 %v412
        %v480 = vunpack.c.l.b16 %v413
        %v481 = vunpack.c.h.b16 %v413
        %v482 = vunpack.c.l.b16 %v414
        %v483 = vunpack.c.h.b16 %v414
        %v484 = vunpack.c.l.b16 %v415
        %v485 = vunpack.c.h.b16 %v415
        %v486 = vunpack.c.l.b16 %v416
        %v487 = vunpack.c.h.b16 %v416
        %v488 = vunpack.c.l.b16 %v417
        %v489 = vunpack.c.h.b16 %v417
        %v490 = vunpack.c.l.b16 %v418
        %v491 = vunpack.c.h.b16 %v418
        %v492 = vunpack.c.l.b16 %v419
        %v493 = vunpack.c.h.b16 %v419
        %v494 = vunpack.c.l.b16 %v420
        %v495 = vunpack.c.h.b16 %v420
        %v496 = vunpack.c.l.b16 %v421
        %v497 = vunpack.c.h.b16 %v421
        %v498 = vunpack.c.l.b16 %v422
        %v499 = vunpack.c.h.b16 %v422
        %v500 = vunpack.c.l.b16 %v423
        %v501 = vunpack.c.h.b16 %v423
        %v502 = vunpack.c.l.b16 %v424
        %v503 = vunpack.c.h.b16 %v424
        %v504 = vunpack.c.l.b16 %v425
        %v505 = vunpack.c.h.b16 %v425
        %v506 = vpack.c.b16 %v476, %v474
        %v507 = vpack.c.b16 %v477, %v475
        %v508 = vpack.c.b16 %v480, %v478
        %v509 = vpack.c.b16 %v481, %v479
        %v510 = vpack.c.b16 %v484, %v482
        %v511 = vpack.c.b16 %v485, %v483
        %v512 = vpack.c.b16 %v488, %v486
        %v513 = vpack.c.b16 %v489, %v487
        %v514 = vpack.c.b16 %v492, %v490
        %v515 = vpack.c.b16 %v493, %v491
        %v516 = vpack.c.b16 %v496, %v494
        %v517 = vpack.c.b16 %v497, %v495
        %v518 = vpack.c.b16 %v500, %v498
        %v519 = vpack.c.b16 %v501, %v499
        %v520 = vpack.c.b16 %v504, %v502
        %v521 = vpack.c.b16 %v505, %v503
        %v570 = vunpack.c.l.b16 %v426
        %v571 = vunpack.c.l.b16 %v427
        %v572 = vunpack.c.l.b16 %v428
        %v573 = vunpack.c.l.b16 %v429
        %v574 = vunpack.c.l.b16 %v430
        %v575 = vunpack.c.l.b16 %v431
        %v576 = vunpack.c.l.b16 %v432
        %v577 = vunpack.c.l.b16 %v433
        %v578 = vunpack.c.l.b16 %v434
        %v579 = vunpack.c.l.b16 %v435
        %v580 = vunpack.c.l.b16 %v436
        %v581 = vunpack.c.l.b16 %v437
        %v582 = vunpack.c.l.b16 %v438
        %v583 = vunpack.c.l.b16 %v439
        %v584 = vunpack.c.l.b16 %v440
        %v585 = vunpack.c.l.b16 %v441
        %v586 = vunpack.c.l.b16 %v442
        %v587 = vunpack.c.l.b16 %v443
        %v588 = vunpack.c.l.b16 %v444
        %v589 = vunpack.c.l.b16 %v445
        %v590 = vunpack.c.l.b16 %v446
        %v591 = vunpack.c.l.b16 %v447
        %v592 = vunpack.c.l.b16 %v448
        %v593 = vunpack.c.l.b16 %v449
        %v594 = vunpack.c.l.b16 %v450
        %v595 = vunpack.c.l.b16 %v451
        %v596 = vunpack.c.l.b16 %v452
        %v597 = vunpack.c.l.b16 %v453
        %v598 = vunpack.c.l.b16 %v454
        %v599 = vunpack.c.l.b16 %v455
        %v600 = vunpack.c.l.b16 %v456
        %v601 = vunpack.c.l.b16 %v457
        %v602 = vpack.c.b16 %v571, %v570
        %v603 = vpack.c.b16 %v573, %v572
        %v604 = vpack.c.b16 %v575, %v574
        %v605 = vpack.c.b16 %v577, %v576
        %v606 = vpack.c.b16 %v579, %v578
        %v607 = vpack.c.b16 %v581, %v580
        %v608 = vpack.c.b16 %v583, %v582
        %v609 = vpack.c.b16 %v585, %v584
        %v610 = vpack.c.b16 %v587, %v586
        %v611 = vpack.c.b16 %v589, %v588
        %v612 = vpack.c.b16 %v591, %v590
        %v613 = vpack.c.b16 %v593, %v592
        %v614 = vpack.c.b16 %v595, %v594
        %v615 = vpack.c.b16 %v597, %v596
        %v616 = vpack.c.b16 %v599, %v598
        %v617 = vpack.c.b16 %v601, %v600
        %634 = vmatprep.subr.bf16.mxu0 0
        %635 = vmatpush1.bf16.msra.mxu0 %v609
        %636 = vmatprep.subr.bf16.mxu0 0
        %637 = vmatpush1.bf16.msra.mxu0 %v608
        %638 = vmatprep.subr.bf16.mxu0 0
        %639 = vmatpush1.bf16.msra.mxu0 %v607
        %640 = vmatprep.subr.bf16.mxu0 0
        %641 = vmatpush1.bf16.msra.mxu0 %v606
        %642 = vmatprep.subr.bf16.mxu0 0
        %643 = vmatpush1.bf16.msra.mxu0 %v605
        %644 = vmatprep.subr.bf16.mxu0 0
        %645 = vmatpush1.bf16.msra.mxu0 %v604
        %646 = vmatprep.subr.bf16.mxu0 0
        %647 = vmatpush1.bf16.msra.mxu0 %v603
        %648 = vmatprep.subr.bf16.mxu0 0
        %649 = vmatpush1.bf16.msra.mxu0 %v602
        %650 = vmatprep.subr.bf16.mxu0 0
        %651 = vmatpush2.bf16.msra.mxu0 %v617
        %652 = vmatprep.subr.bf16.mxu0 0
        %653 = vmatpush2.bf16.msra.mxu0 %v616
        %654 = vmatprep.subr.bf16.mxu0 0
        %655 = vmatpush2.bf16.msra.mxu0 %v615
        %656 = vmatprep.subr.bf16.mxu0 0
        %657 = vmatpush2.bf16.msra.mxu0 %v614
        %658 = vmatprep.subr.bf16.mxu0 0
        %659 = vmatpush2.bf16.msra.mxu0 %v613
        %660 = vmatprep.subr.bf16.mxu0 0
        %661 = vmatpush2.bf16.msra.mxu0 %v612
        %662 = vmatprep.subr.bf16.mxu0 0
        %663 = vmatpush2.bf16.msra.mxu0 %v611
        %664 = vmatprep.subr.bf16.mxu0 0
        %665 = vmatpush2.bf16.msra.mxu0 %v610
        %666 = vmatprep.mubr.bf16.mxu0 %v507
        %667 = vmatmul.mubr.bf16.gmra.mxu0 %v506
        %v668 = vpop.f32.mrf.mxu0
        %v669 = vadd.f32 0.0, %v668
        %v670 = vpop.f32.mrf.mxu0
        %v671 = vpop.f32.mrf.mxu0
        %v672 = vadd.f32 0.0, %v671
        %v673 = vpop.f32.mrf.mxu0
        %674 = vmatprep.mubr.bf16.mxu0 %v509
        %675 = vmatmul.mubr.bf16.gmra.mxu0 %v508
        %v676 = vpop.f32.mrf.mxu0
        %v677 = vadd.f32 0.0, %v676
        %v678 = vpop.f32.mrf.mxu0
        %v679 = vpop.f32.mrf.mxu0
        %v680 = vadd.f32 0.0, %v679
        %v681 = vpop.f32.mrf.mxu0
        %682 = vmatprep.mubr.bf16.mxu0 %v511
        %683 = vmatmul.mubr.bf16.gmra.mxu0 %v510
        %v684 = vpop.f32.mrf.mxu0
        %v685 = vadd.f32 0.0, %v684
        %v686 = vpop.f32.mrf.mxu0
        %v687 = vpop.f32.mrf.mxu0
        %v688 = vadd.f32 0.0, %v687
        %v689 = vpop.f32.mrf.mxu0
        %690 = vmatprep.mubr.bf16.mxu0 %v513
        %691 = vmatmul.mubr.bf16.gmra.mxu0 %v512
        %v692 = vpop.f32.mrf.mxu0
        %v693 = vadd.f32 0.0, %v692
        %v694 = vpop.f32.mrf.mxu0
        %v695 = vpop.f32.mrf.mxu0
        %v696 = vadd.f32 0.0, %v695
        %v697 = vpop.f32.mrf.mxu0
        %698 = vmatprep.mubr.bf16.mxu0 %v515
        %699 = vmatmul.mubr.bf16.gmra.mxu0 %v514
        %v700 = vpop.f32.mrf.mxu0
        %v701 = vadd.f32 0.0, %v700
        %v702 = vpop.f32.mrf.mxu0
        %v703 = vpop.f32.mrf.mxu0
        %v704 = vadd.f32 0.0, %v703
        %v705 = vpop.f32.mrf.mxu0
        %706 = vmatprep.mubr.bf16.mxu0 %v517
        %707 = vmatmul.mubr.bf16.gmra.mxu0 %v516
        %v708 = vpop.f32.mrf.mxu0
        %v709 = vadd.f32 0.0, %v708
        %v710 = vpop.f32.mrf.mxu0
        %v711 = vpop.f32.mrf.mxu0
        %v712 = vadd.f32 0.0, %v711
        %v713 = vpop.f32.mrf.mxu0
        %714 = vmatprep.mubr.bf16.mxu0 %v519
        %715 = vmatmul.mubr.bf16.gmra.mxu0 %v518
        %v716 = vpop.f32.mrf.mxu0
        %v717 = vadd.f32 0.0, %v716
        %v718 = vpop.f32.mrf.mxu0
        %v719 = vpop.f32.mrf.mxu0
        %v720 = vadd.f32 0.0, %v719
        %v721 = vpop.f32.mrf.mxu0
        %722 = vmatprep.mubr.bf16.mxu0 %v521
        %723 = vmatmul.mubr.bf16.gmra.mxu0 %v520
        %v724 = vpop.f32.mrf.mxu0
        %v725 = vadd.f32 0.0, %v724
        %v726 = vpop.f32.mrf.mxu0
        %v727 = vpop.f32.mrf.mxu0
        %v728 = vadd.f32 0.0, %v727
        %v729 = vpop.f32.mrf.mxu0
        %730 = vdwg.mxu0
        %v731 = vld [vmem:[%s344] sm:$0xf]
        %v732 = vld [vmem:[%s344 + $0x4] sm:$0xf]
        %v733 = vld [vmem:[%s344 + $0x8] sm:$0xf]
        %v734 = vld [vmem:[%s344 + $0xc] sm:$0xf]
        %v735 = vld [vmem:[%s344 + $0x10] sm:$0xf]
        %v736 = vld [vmem:[%s344 + $0x14] sm:$0xf]
        %v737 = vld [vmem:[%s344 + $0x18] sm:$0xf]
        %v738 = vld [vmem:[%s344 + $0x1c] sm:$0xf]
        %v739 = vld [vmem:[%s344 + $0x20] sm:$0xf]
        %v740 = vld [vmem:[%s344 + $0x24] sm:$0xf]
        %v741 = vld [vmem:[%s344 + $0x28] sm:$0xf]
        %v742 = vld [vmem:[%s344 + $0x2c] sm:$0xf]
        %v743 = vld [vmem:[%s344 + $0x30] sm:$0xf]
        %v744 = vld [vmem:[%s344 + $0x34] sm:$0xf]
        %v745 = vld [vmem:[%s344 + $0x38] sm:$0xf]
        %v746 = vld [vmem:[%s344 + $0x3c] sm:$0xf]
        %v747 = vld [vmem:[%s344 + $0x40] sm:$0xf]
        %v748 = vld [vmem:[%s344 + $0x44] sm:$0xf]
        %v749 = vld [vmem:[%s344 + $0x48] sm:$0xf]
        %v750 = vld [vmem:[%s344 + $0x4c] sm:$0xf]
        %v751 = vld [vmem:[%s344 + $0x50] sm:$0xf]
        %v752 = vld [vmem:[%s344 + $0x54] sm:$0xf]
        %v753 = vld [vmem:[%s344 + $0x58] sm:$0xf]
        %v754 = vld [vmem:[%s344 + $0x5c] sm:$0xf]
        %v755 = vld [vmem:[%s344 + $0x60] sm:$0xf]
        %v756 = vld [vmem:[%s344 + $0x64] sm:$0xf]
        %v757 = vld [vmem:[%s344 + $0x68] sm:$0xf]
        %v758 = vld [vmem:[%s344 + $0x6c] sm:$0xf]
        %v759 = vld [vmem:[%s344 + $0x70] sm:$0xf]
        %v760 = vld [vmem:[%s344 + $0x74] sm:$0xf]
        %v761 = vld [vmem:[%s344 + $0x78] sm:$0xf]
        %v762 = vld [vmem:[%s344 + $0x7c] sm:$0xf]
        %v795 = vunpack.c.l.b16 %v731
        %v796 = vunpack.c.l.b16 %v732
        %v797 = vunpack.c.l.b16 %v733
        %v798 = vunpack.c.l.b16 %v734
        %v799 = vunpack.c.l.b16 %v735
        %v800 = vunpack.c.l.b16 %v736
        %v801 = vunpack.c.l.b16 %v737
        %v802 = vunpack.c.l.b16 %v738
        %v803 = vunpack.c.l.b16 %v739
        %v804 = vunpack.c.l.b16 %v740
        %v805 = vunpack.c.l.b16 %v741
        %v806 = vunpack.c.l.b16 %v742
        %v807 = vunpack.c.l.b16 %v743
        %v808 = vunpack.c.l.b16 %v744
        %v809 = vunpack.c.l.b16 %v745
        %v810 = vunpack.c.l.b16 %v746
        %v811 = vunpack.c.l.b16 %v747
        %v812 = vunpack.c.l.b16 %v748
        %v813 = vunpack.c.l.b16 %v749
        %v814 = vunpack.c.l.b16 %v750
        %v815 = vunpack.c.l.b16 %v751
        %v816 = vunpack.c.l.b16 %v752
        %v817 = vunpack.c.l.b16 %v753
        %v818 = vunpack.c.l.b16 %v754
        %v819 = vunpack.c.l.b16 %v755
        %v820 = vunpack.c.l.b16 %v756
        %v821 = vunpack.c.l.b16 %v757
        %v822 = vunpack.c.l.b16 %v758
        %v823 = vunpack.c.l.b16 %v759
        %v824 = vunpack.c.l.b16 %v760
        %v825 = vunpack.c.l.b16 %v761
        %v826 = vunpack.c.l.b16 %v762
        %v827 = vpack.c.b16 %v796, %v795
        %v828 = vpack.c.b16 %v798, %v797
        %v829 = vpack.c.b16 %v800, %v799
        %v830 = vpack.c.b16 %v802, %v801
        %v831 = vpack.c.b16 %v804, %v803
        %v832 = vpack.c.b16 %v806, %v805
        %v833 = vpack.c.b16 %v808, %v807
        %v834 = vpack.c.b16 %v810, %v809
        %v835 = vpack.c.b16 %v812, %v811
        %v836 = vpack.c.b16 %v814, %v813
        %v837 = vpack.c.b16 %v816, %v815
        %v838 = vpack.c.b16 %v818, %v817
        %v839 = vpack.c.b16 %v820, %v819
        %v840 = vpack.c.b16 %v822, %v821
        %v841 = vpack.c.b16 %v824, %v823
        %v842 = vpack.c.b16 %v826, %v825
        %859 = vmatprep.subr.bf16.mxu0 0
        %860 = vmatpush1.bf16.msra.mxu0 %v834
        %861 = vmatprep.subr.bf16.mxu0 0
        %862 = vmatpush1.bf16.msra.mxu0 %v833
        %863 = vmatprep.subr.bf16.mxu0 0
        %864 = vmatpush1.bf16.msra.mxu0 %v832
        %865 = vmatprep.subr.bf16.mxu0 0
        %866 = vmatpush1.bf16.msra.mxu0 %v831
        %867 = vmatprep.subr.bf16.mxu0 0
        %868 = vmatpush1.bf16.msra.mxu0 %v830
        %869 = vmatprep.subr.bf16.mxu0 0
        %870 = vmatpush1.bf16.msra.mxu0 %v829
        %871 = vmatprep.subr.bf16.mxu0 0
        %872 = vmatpush1.bf16.msra.mxu0 %v828
        %873 = vmatprep.subr.bf16.mxu0 0
        %874 = vmatpush1.bf16.msra.mxu0 %v827
        %875 = vmatprep.subr.bf16.mxu0 0
        %876 = vmatpush2.bf16.msra.mxu0 %v842
        %877 = vmatprep.subr.bf16.mxu0 0
        %878 = vmatpush2.bf16.msra.mxu0 %v841
        %879 = vmatprep.subr.bf16.mxu0 0
        %880 = vmatpush2.bf16.msra.mxu0 %v840
        %881 = vmatprep.subr.bf16.mxu0 0
        %882 = vmatpush2.bf16.msra.mxu0 %v839
        %883 = vmatprep.subr.bf16.mxu0 0
        %884 = vmatpush2.bf16.msra.mxu0 %v838
        %885 = vmatprep.subr.bf16.mxu0 0
        %886 = vmatpush2.bf16.msra.mxu0 %v837
        %887 = vmatprep.subr.bf16.mxu0 0
        %888 = vmatpush2.bf16.msra.mxu0 %v836
        %889 = vmatprep.subr.bf16.mxu0 0
        %890 = vmatpush2.bf16.msra.mxu0 %v835
        %891 = vmatprep.mubr.bf16.mxu0 %v507
        %892 = vmatmul.mubr.bf16.gmra.mxu0 %v506
        %v893 = vpop.f32.mrf.mxu0
        %v894 = vadd.f32 0.0, %v893
        %v895 = vpop.f32.mrf.mxu0
        %v896 = vpop.f32.mrf.mxu0
        %v897 = vadd.f32 0.0, %v896
        %v898 = vpop.f32.mrf.mxu0
        %899 = vmatprep.mubr.bf16.mxu0 %v509
        %900 = vmatmul.mubr.bf16.gmra.mxu0 %v508
        %v901 = vpop.f32.mrf.mxu0
        %v902 = vadd.f32 0.0, %v901
        %v903 = vpop.f32.mrf.mxu0
        %v904 = vpop.f32.mrf.mxu0
        %v905 = vadd.f32 0.0, %v904
        %v906 = vpop.f32.mrf.mxu0
        %907 = vmatprep.mubr.bf16.mxu0 %v511
        %908 = vmatmul.mubr.bf16.gmra.mxu0 %v510
        %v909 = vpop.f32.mrf.mxu0
        %v910 = vadd.f32 0.0, %v909
        %v911 = vpop.f32.mrf.mxu0
        %v912 = vpop.f32.mrf.mxu0
        %v913 = vadd.f32 0.0, %v912
        %v914 = vpop.f32.mrf.mxu0
        %915 = vmatprep.mubr.bf16.mxu0 %v513
        %916 = vmatmul.mubr.bf16.gmra.mxu0 %v512
        %v917 = vpop.f32.mrf.mxu0
        %v918 = vadd.f32 0.0, %v917
        %v919 = vpop.f32.mrf.mxu0
        %v920 = vpop.f32.mrf.mxu0
        %v921 = vadd.f32 0.0, %v920
        %v922 = vpop.f32.mrf.mxu0
        %923 = vmatprep.mubr.bf16.mxu0 %v515
        %924 = vmatmul.mubr.bf16.gmra.mxu0 %v514
        %v925 = vpop.f32.mrf.mxu0
        %v926 = vadd.f32 0.0, %v925
        %v927 = vpop.f32.mrf.mxu0
        %v928 = vpop.f32.mrf.mxu0
        %v929 = vadd.f32 0.0, %v928
        %v930 = vpop.f32.mrf.mxu0
        %931 = vmatprep.mubr.bf16.mxu0 %v517
        %932 = vmatmul.mubr.bf16.gmra.mxu0 %v516
        %v933 = vpop.f32.mrf.mxu0
        %v934 = vadd.f32 0.0, %v933
        %v935 = vpop.f32.mrf.mxu0
        %v936 = vpop.f32.mrf.mxu0
        %v937 = vadd.f32 0.0, %v936
        %v938 = vpop.f32.mrf.mxu0
        %939 = vmatprep.mubr.bf16.mxu0 %v519
        %940 = vmatmul.mubr.bf16.gmra.mxu0 %v518
        %v941 = vpop.f32.mrf.mxu0
        %v942 = vadd.f32 0.0, %v941
        %v943 = vpop.f32.mrf.mxu0
        %v944 = vpop.f32.mrf.mxu0
        %v945 = vadd.f32 0.0, %v944
        %v946 = vpop.f32.mrf.mxu0
        %947 = vmatprep.mubr.bf16.mxu0 %v521
        %948 = vmatmul.mubr.bf16.gmra.mxu0 %v520
        %v949 = vpop.f32.mrf.mxu0
        %v950 = vadd.f32 0.0, %v949
        %v951 = vpop.f32.mrf.mxu0
        %v952 = vpop.f32.mrf.mxu0
        %v953 = vadd.f32 0.0, %v952
        %v954 = vpop.f32.mrf.mxu0
        %955 = vdwg.mxu0
        %v956 = vld [vmem:[%s353] sm:$0xf]
        %v957 = vld [vmem:[%s353 + $0x4] sm:$0xf]
        %v958 = vld [vmem:[%s353 + $0x8] sm:$0xf]
        %v959 = vld [vmem:[%s353 + $0xc] sm:$0xf]
        %v960 = vld [vmem:[%s353 + $0x10] sm:$0xf]
        %v961 = vld [vmem:[%s353 + $0x14] sm:$0xf]
        %v962 = vld [vmem:[%s353 + $0x18] sm:$0xf]
        %v963 = vld [vmem:[%s353 + $0x1c] sm:$0xf]
        %v964 = vld [vmem:[%s353 + $0x20] sm:$0xf]
        %v965 = vld [vmem:[%s353 + $0x24] sm:$0xf]
        %v966 = vld [vmem:[%s353 + $0x28] sm:$0xf]
        %v967 = vld [vmem:[%s353 + $0x2c] sm:$0xf]
        %v968 = vld [vmem:[%s353 + $0x30] sm:$0xf]
        %v969 = vld [vmem:[%s353 + $0x34] sm:$0xf]
        %v970 = vld [vmem:[%s353 + $0x38] sm:$0xf]
        %v971 = vld [vmem:[%s353 + $0x3c] sm:$0xf]
        %v972 = vld [vmem:[%s353 + $0x40] sm:$0xf]
        %v973 = vld [vmem:[%s353 + $0x44] sm:$0xf]
        %v974 = vld [vmem:[%s353 + $0x48] sm:$0xf]
        %v975 = vld [vmem:[%s353 + $0x4c] sm:$0xf]
        %v976 = vld [vmem:[%s353 + $0x50] sm:$0xf]
        %v977 = vld [vmem:[%s353 + $0x54] sm:$0xf]
        %v978 = vld [vmem:[%s353 + $0x58] sm:$0xf]
        %v979 = vld [vmem:[%s353 + $0x5c] sm:$0xf]
        %v980 = vld [vmem:[%s353 + $0x60] sm:$0xf]
        %v981 = vld [vmem:[%s353 + $0x64] sm:$0xf]
        %v982 = vld [vmem:[%s353 + $0x68] sm:$0xf]
        %v983 = vld [vmem:[%s353 + $0x6c] sm:$0xf]
        %v984 = vld [vmem:[%s353 + $0x70] sm:$0xf]
        %v985 = vld [vmem:[%s353 + $0x74] sm:$0xf]
        %v986 = vld [vmem:[%s353 + $0x78] sm:$0xf]
        %v987 = vld [vmem:[%s353 + $0x7c] sm:$0xf]
        %v1020 = vunpack.c.l.b16 %v956
        %v1021 = vunpack.c.l.b16 %v957
        %v1022 = vunpack.c.l.b16 %v958
        %v1023 = vunpack.c.l.b16 %v959
        %v1024 = vunpack.c.l.b16 %v960
        %v1025 = vunpack.c.l.b16 %v961
        %v1026 = vunpack.c.l.b16 %v962
        %v1027 = vunpack.c.l.b16 %v963
        %v1028 = vunpack.c.l.b16 %v964
        %v1029 = vunpack.c.l.b16 %v965
        %v1030 = vunpack.c.l.b16 %v966
        %v1031 = vunpack.c.l.b16 %v967
        %v1032 = vunpack.c.l.b16 %v968
        %v1033 = vunpack.c.l.b16 %v969
        %v1034 = vunpack.c.l.b16 %v970
        %v1035 = vunpack.c.l.b16 %v971
        %v1036 = vunpack.c.l.b16 %v972
        %v1037 = vunpack.c.l.b16 %v973
        %v1038 = vunpack.c.l.b16 %v974
        %v1039 = vunpack.c.l.b16 %v975
        %v1040 = vunpack.c.l.b16 %v976
        %v1041 = vunpack.c.l.b16 %v977
        %v1042 = vunpack.c.l.b16 %v978
        %v1043 = vunpack.c.l.b16 %v979
        %v1044 = vunpack.c.l.b16 %v980
        %v1045 = vunpack.c.l.b16 %v981
        %v1046 = vunpack.c.l.b16 %v982
        %v1047 = vunpack.c.l.b16 %v983
        %v1048 = vunpack.c.l.b16 %v984
        %v1049 = vunpack.c.l.b16 %v985
        %v1050 = vunpack.c.l.b16 %v986
        %v1051 = vunpack.c.l.b16 %v987
        %v1052 = vpack.c.b16 %v1021, %v1020
        %v1053 = vpack.c.b16 %v1023, %v1022
        %v1054 = vpack.c.b16 %v1025, %v1024
        %v1055 = vpack.c.b16 %v1027, %v1026
        %v1056 = vpack.c.b16 %v1029, %v1028
        %v1057 = vpack.c.b16 %v1031, %v1030
        %v1058 = vpack.c.b16 %v1033, %v1032
        %v1059 = vpack.c.b16 %v1035, %v1034
        %v1060 = vpack.c.b16 %v1037, %v1036
        %v1061 = vpack.c.b16 %v1039, %v1038
        %v1062 = vpack.c.b16 %v1041, %v1040
        %v1063 = vpack.c.b16 %v1043, %v1042
        %v1064 = vpack.c.b16 %v1045, %v1044
        %v1065 = vpack.c.b16 %v1047, %v1046
        %v1066 = vpack.c.b16 %v1049, %v1048
        %v1067 = vpack.c.b16 %v1051, %v1050
        %1084 = vmatprep.subr.bf16.mxu0 0
        %1085 = vmatpush1.bf16.msra.mxu0 %v1059
        %1086 = vmatprep.subr.bf16.mxu0 0
        %1087 = vmatpush1.bf16.msra.mxu0 %v1058
        %1088 = vmatprep.subr.bf16.mxu0 0
        %1089 = vmatpush1.bf16.msra.mxu0 %v1057
        %1090 = vmatprep.subr.bf16.mxu0 0
        %1091 = vmatpush1.bf16.msra.mxu0 %v1056
        %1092 = vmatprep.subr.bf16.mxu0 0
        %1093 = vmatpush1.bf16.msra.mxu0 %v1055
        %1094 = vmatprep.subr.bf16.mxu0 0
        %1095 = vmatpush1.bf16.msra.mxu0 %v1054
        %1096 = vmatprep.subr.bf16.mxu0 0
        %1097 = vmatpush1.bf16.msra.mxu0 %v1053
        %1098 = vmatprep.subr.bf16.mxu0 0
        %1099 = vmatpush1.bf16.msra.mxu0 %v1052
        %1100 = vmatprep.subr.bf16.mxu0 0
        %1101 = vmatpush2.bf16.msra.mxu0 %v1067
        %1102 = vmatprep.subr.bf16.mxu0 0
        %1103 = vmatpush2.bf16.msra.mxu0 %v1066
        %1104 = vmatprep.subr.bf16.mxu0 0
        %1105 = vmatpush2.bf16.msra.mxu0 %v1065
        %1106 = vmatprep.subr.bf16.mxu0 0
        %1107 = vmatpush2.bf16.msra.mxu0 %v1064
        %1108 = vmatprep.subr.bf16.mxu0 0
        %1109 = vmatpush2.bf16.msra.mxu0 %v1063
        %1110 = vmatprep.subr.bf16.mxu0 0
        %1111 = vmatpush2.bf16.msra.mxu0 %v1062
        %1112 = vmatprep.subr.bf16.mxu0 0
        %1113 = vmatpush2.bf16.msra.mxu0 %v1061
        %1114 = vmatprep.subr.bf16.mxu0 0
        %1115 = vmatpush2.bf16.msra.mxu0 %v1060
        %1116 = vmatprep.mubr.bf16.mxu0 %v507
        %1117 = vmatmul.mubr.bf16.gmra.mxu0 %v506
        %v1118 = vpop.f32.mrf.mxu0
        %v1119 = vadd.f32 0.0, %v1118
        %v1120 = vpop.f32.mrf.mxu0
        %v1121 = vpop.f32.mrf.mxu0
        %v1122 = vadd.f32 0.0, %v1121
        %v1123 = vpop.f32.mrf.mxu0
        %1124 = vmatprep.mubr.bf16.mxu0 %v509
        %1125 = vmatmul.mubr.bf16.gmra.mxu0 %v508
        %v1126 = vpop.f32.mrf.mxu0
        %v1127 = vadd.f32 0.0, %v1126
        %v1128 = vpop.f32.mrf.mxu0
        %v1129 = vpop.f32.mrf.mxu0
        %v1130 = vadd.f32 0.0, %v1129
        %v1131 = vpop.f32.mrf.mxu0
        %1132 = vmatprep.mubr.bf16.mxu0 %v511
        %1133 = vmatmul.mubr.bf16.gmra.mxu0 %v510
        %v1134 = vpop.f32.mrf.mxu0
        %v1135 = vadd.f32 0.0, %v1134
        %v1136 = vpop.f32.mrf.mxu0
        %v1137 = vpop.f32.mrf.mxu0
        %v1138 = vadd.f32 0.0, %v1137
        %v1139 = vpop.f32.mrf.mxu0
        %1140 = vmatprep.mubr.bf16.mxu0 %v513
        %1141 = vmatmul.mubr.bf16.gmra.mxu0 %v512
        %v1142 = vpop.f32.mrf.mxu0
        %v1143 = vadd.f32 0.0, %v1142
        %v1144 = vpop.f32.mrf.mxu0
        %v1145 = vpop.f32.mrf.mxu0
        %v1146 = vadd.f32 0.0, %v1145
        %v1147 = vpop.f32.mrf.mxu0
        %1148 = vmatprep.mubr.bf16.mxu0 %v515
        %1149 = vmatmul.mubr.bf16.gmra.mxu0 %v514
        %v1150 = vpop.f32.mrf.mxu0
        %v1151 = vadd.f32 0.0, %v1150
        %v1152 = vpop.f32.mrf.mxu0
        %v1153 = vpop.f32.mrf.mxu0
        %v1154 = vadd.f32 0.0, %v1153
        %v1155 = vpop.f32.mrf.mxu0
        %1156 = vmatprep.mubr.bf16.mxu0 %v517
        %1157 = vmatmul.mubr.bf16.gmra.mxu0 %v516
        %v1158 = vpop.f32.mrf.mxu0
        %v1159 = vadd.f32 0.0, %v1158
        %v1160 = vpop.f32.mrf.mxu0
        %v1161 = vpop.f32.mrf.mxu0
        %v1162 = vadd.f32 0.0, %v1161
        %v1163 = vpop.f32.mrf.mxu0
        %1164 = vmatprep.mubr.bf16.mxu0 %v519
        %1165 = vmatmul.mubr.bf16.gmra.mxu0 %v518
        %v1166 = vpop.f32.mrf.mxu0
        %v1167 = vadd.f32 0.0, %v1166
        %v1168 = vpop.f32.mrf.mxu0
        %v1169 = vpop.f32.mrf.mxu0
        %v1170 = vadd.f32 0.0, %v1169
        %v1171 = vpop.f32.mrf.mxu0
        %1172 = vmatprep.mubr.bf16.mxu0 %v521
        %1173 = vmatmul.mubr.bf16.gmra.mxu0 %v520
        %v1174 = vpop.f32.mrf.mxu0
        %v1175 = vadd.f32 0.0, %v1174
        %v1176 = vpop.f32.mrf.mxu0
        %v1177 = vpop.f32.mrf.mxu0
        %v1178 = vadd.f32 0.0, %v1177
        %v1179 = vpop.f32.mrf.mxu0
        %1180 = vdwg.mxu0
        %v1181 = vpack.c.bf16 %v672, %v669
        %v1182 = vpack.c.bf16 %v680, %v677
        %v1183 = vpack.c.bf16 %v688, %v685
        %v1184 = vpack.c.bf16 %v696, %v693
        %v1185 = vpack.c.bf16 %v704, %v701
        %v1186 = vpack.c.bf16 %v712, %v709
        %v1187 = vpack.c.bf16 %v720, %v717
        %v1188 = vpack.c.bf16 %v728, %v725
        %v1189 = vpack.c.bf16 %v897, %v894
        %v1190 = vpack.c.bf16 %v905, %v902
        %v1191 = vpack.c.bf16 %v913, %v910
        %v1192 = vpack.c.bf16 %v921, %v918
        %v1193 = vpack.c.bf16 %v929, %v926
        %v1194 = vpack.c.bf16 %v937, %v934
        %v1195 = vpack.c.bf16 %v945, %v942
        %v1196 = vpack.c.bf16 %v953, %v950
        %1197 = vmatprep.subr.bf16.mxu0 0
        %1198 = vmatpush1.bf16.xpose.msra.mxu0 %v1196
        %1199 = vmatprep.subr.bf16.mxu0 0
        %1200 = vmatpush1.bf16.xpose.msra.mxu0 %v1195
        %1201 = vmatprep.subr.bf16.mxu0 0
        %1202 = vmatpush1.bf16.xpose.msra.mxu0 %v1194
        %1203 = vmatprep.subr.bf16.mxu0 0
        %1204 = vmatpush1.bf16.xpose.msra.mxu0 %v1193
        %1205 = vmatprep.subr.bf16.mxu0 0
        %1206 = vmatpush1.bf16.xpose.msra.mxu0 %v1192
        %1207 = vmatprep.subr.bf16.mxu0 0
        %1208 = vmatpush1.bf16.xpose.msra.mxu0 %v1191
        %1209 = vmatprep.subr.bf16.mxu0 0
        %1210 = vmatpush1.bf16.xpose.msra.mxu0 %v1190
        %1211 = vmatprep.subr.bf16.mxu0 0
        %1212 = vmatpush1.bf16.xpose.msra.mxu0 %v1189
        %1213 = vmatprep.subr.bf16.mxu0 0
        %1214 = vmatpush2.bf16.xpose.msra.mxu0 0
        %1215 = vmatprep.subr.bf16.mxu0 0
        %1216 = vmatpush2.bf16.xpose.msra.mxu0 0
        %1217 = vmatprep.subr.bf16.mxu0 0
        %1218 = vmatpush2.bf16.xpose.msra.mxu0 0
        %1219 = vmatprep.subr.bf16.mxu0 0
        %1220 = vmatpush2.bf16.xpose.msra.mxu0 0
        %1221 = vmatprep.subr.bf16.mxu0 0
        %1222 = vmatpush2.bf16.xpose.msra.mxu0 0
        %1223 = vmatprep.subr.bf16.mxu0 0
        %1224 = vmatpush2.bf16.xpose.msra.mxu0 0
        %1225 = vmatprep.subr.bf16.mxu0 0
        %1226 = vmatpush2.bf16.xpose.msra.mxu0 0
        %1227 = vmatprep.subr.bf16.mxu0 0
        %1228 = vmatpush2.bf16.xpose.msra.mxu0 0
        %1229 = vmatprep.mubr.bf16.mxu0 0
        %1230 = vmatmul.mubr.bf16.gmra.mxu0 %v1181
        %v1231 = vpop.f32.mrf.mxu0
        %v1232 = vadd.f32 0.0, %v1231
        %v1233 = vpop.f32.mrf.mxu0
        %v1234 = vpop.f32.mrf.mxu0
        %v1235 = vadd.f32 0.0, %v1234
        %v1236 = vpop.f32.mrf.mxu0
        %1237 = vmatprep.mubr.bf16.mxu0 0
        %1238 = vmatmul.mubr.bf16.gmra.mxu0 %v1182
        %v1239 = vpop.f32.mrf.mxu0
        %v1240 = vadd.f32 0.0, %v1239
        %v1241 = vpop.f32.mrf.mxu0
        %v1242 = vpop.f32.mrf.mxu0
        %v1243 = vadd.f32 0.0, %v1242
        %v1244 = vpop.f32.mrf.mxu0
        %1245 = vmatprep.mubr.bf16.mxu0 0
        %1246 = vmatmul.mubr.bf16.gmra.mxu0 %v1183
        %v1247 = vpop.f32.mrf.mxu0
        %v1248 = vadd.f32 0.0, %v1247
        %v1249 = vpop.f32.mrf.mxu0
        %v1250 = vpop.f32.mrf.mxu0
        %v1251 = vadd.f32 0.0, %v1250
        %v1252 = vpop.f32.mrf.mxu0
        %1253 = vmatprep.mubr.bf16.mxu0 0
        %1254 = vmatmul.mubr.bf16.gmra.mxu0 %v1184
        %v1255 = vpop.f32.mrf.mxu0
        %v1256 = vadd.f32 0.0, %v1255
        %v1257 = vpop.f32.mrf.mxu0
        %v1258 = vpop.f32.mrf.mxu0
        %v1259 = vadd.f32 0.0, %v1258
        %v1260 = vpop.f32.mrf.mxu0
        %1261 = vmatprep.mubr.bf16.mxu0 0
        %1262 = vmatmul.mubr.bf16.gmra.mxu0 %v1185
        %v1263 = vpop.f32.mrf.mxu0
        %v1264 = vadd.f32 0.0, %v1263
        %v1265 = vpop.f32.mrf.mxu0
        %v1266 = vpop.f32.mrf.mxu0
        %v1267 = vadd.f32 0.0, %v1266
        %v1268 = vpop.f32.mrf.mxu0
        %1269 = vmatprep.mubr.bf16.mxu0 0
        %1270 = vmatmul.mubr.bf16.gmra.mxu0 %v1186
        %v1271 = vpop.f32.mrf.mxu0
        %v1272 = vadd.f32 0.0, %v1271
        %v1273 = vpop.f32.mrf.mxu0
        %v1274 = vpop.f32.mrf.mxu0
        %v1275 = vadd.f32 0.0, %v1274
        %v1276 = vpop.f32.mrf.mxu0
        %1277 = vmatprep.mubr.bf16.mxu0 0
        %1278 = vmatmul.mubr.bf16.gmra.mxu0 %v1187
        %v1279 = vpop.f32.mrf.mxu0
        %v1280 = vadd.f32 0.0, %v1279
        %v1281 = vpop.f32.mrf.mxu0
        %v1282 = vpop.f32.mrf.mxu0
        %v1283 = vadd.f32 0.0, %v1282
        %v1284 = vpop.f32.mrf.mxu0
        %1285 = vmatprep.mubr.bf16.mxu0 0
        %1286 = vmatmul.mubr.bf16.gmra.mxu0 %v1188
        %v1287 = vpop.f32.mrf.mxu0
        %v1288 = vadd.f32 0.0, %v1287
        %v1289 = vpop.f32.mrf.mxu0
        %v1290 = vpop.f32.mrf.mxu0
        %v1291 = vadd.f32 0.0, %v1290
        %v1292 = vpop.f32.mrf.mxu0
        %1293 = vdwg.mxu0
        %v1294 = vmul.f32 %v1232, 0.088388346
        %v1295 = vmul.f32 %v1235, 0.088388346
        %v1296 = vmul.f32 %v1240, 0.088388346
        %v1297 = vmul.f32 %v1243, 0.088388346
        %v1298 = vmul.f32 %v1248, 0.088388346
        %v1299 = vmul.f32 %v1251, 0.088388346
        %v1300 = vmul.f32 %v1256, 0.088388346
        %v1301 = vmul.f32 %v1259, 0.088388346
        %v1302 = vmul.f32 %v1264, 0.088388346
        %v1303 = vmul.f32 %v1267, 0.088388346
        %v1304 = vmul.f32 %v1272, 0.088388346
        %v1305 = vmul.f32 %v1275, 0.088388346
        %v1306 = vmul.f32 %v1280, 0.088388346
        %v1307 = vmul.f32 %v1283, 0.088388346
        %v1308 = vmul.f32 %v1288, 0.088388346
        %v1309 = vmul.f32 %v1291, 0.088388346
        %v1310 = vmax.f32 %v1294, %v1298
        %v1311 = vmax.f32 %v1295, %v1299
        %v1312 = vmax.f32 %v1296, %v1300
        %v1313 = vmax.f32 %v1297, %v1301
        %v1314 = vmax.f32 %v1310, %v1302
        %v1315 = vmax.f32 %v1311, %v1303
        %v1316 = vmax.f32 %v1312, %v1304
        %v1317 = vmax.f32 %v1313, %v1305
        %v1318 = vmax.f32 %v1314, %v1306
        %v1319 = vmax.f32 %v1315, %v1307
        %v1320 = vmax.f32 %v1316, %v1308
        %v1321 = vmax.f32 %v1317, %v1309
        %v1322 = vmax.f32 %v1318, %v1319
        %v1323 = vmax.f32 %v1320, %v1321
        %v1324 = vmax.f32 %v1322, %v1323
        %v1325 = vrot.slane %v1324, 4
        %v1326 = vmax.f32 %v1324, %v1325
        %v1327 = vrot.slane %v1326, 2
        %v1328 = vmax.f32 %v1326, %v1327
        %v1329 = vrot.slane %v1328, 1
        %v1330 = vmax.f32 %v1328, %v1329
        %v1331 = vsub.f32 %v1294, %v1330
        %v1332 = vsub.f32 %v1295, %v1330
        %v1333 = vsub.f32 %v1296, %v1330
        %v1334 = vsub.f32 %v1297, %v1330
        %v1335 = vsub.f32 %v1298, %v1330
        %v1336 = vsub.f32 %v1299, %v1330
        %v1337 = vsub.f32 %v1300, %v1330
        %v1338 = vsub.f32 %v1301, %v1330
        %v1339 = vsub.f32 %v1302, %v1330
        %v1340 = vsub.f32 %v1303, %v1330
        %v1341 = vsub.f32 %v1304, %v1330
        %v1342 = vsub.f32 %v1305, %v1330
        %v1343 = vsub.f32 %v1306, %v1330
        %v1344 = vsub.f32 %v1307, %v1330
        %v1345 = vsub.f32 %v1308, %v1330
        %v1346 = vsub.f32 %v1309, %v1330
        %v1347 = vmul.f32 %v1331, 1.442695
        %v1348 = vpow.pop %v1347
        %v1349 = vmul.f32 %v1332, 1.442695
        %v1350 = vpow.pop %v1349
        %v1351 = vmul.f32 %v1333, 1.442695
        %v1352 = vpow.pop %v1351
        %v1353 = vmul.f32 %v1334, 1.442695
        %v1354 = vpow.pop %v1353
        %v1355 = vmul.f32 %v1335, 1.442695
        %v1356 = vpow.pop %v1355
        %v1357 = vmul.f32 %v1336, 1.442695
        %v1358 = vpow.pop %v1357
        %v1359 = vmul.f32 %v1337, 1.442695
        %v1360 = vpow.pop %v1359
        %v1361 = vmul.f32 %v1338, 1.442695
        %v1362 = vpow.pop %v1361
        %v1363 = vmul.f32 %v1339, 1.442695
        %v1364 = vpow.pop %v1363
        %v1365 = vmul.f32 %v1340, 1.442695
        %v1366 = vpow.pop %v1365
        %v1367 = vmul.f32 %v1341, 1.442695
        %v1368 = vpow.pop %v1367
        %v1369 = vmul.f32 %v1342, 1.442695
        %v1370 = vpow.pop %v1369
        %v1371 = vmul.f32 %v1343, 1.442695
        %v1372 = vpow.pop %v1371
        %v1373 = vmul.f32 %v1344, 1.442695
        %v1374 = vpow.pop %v1373
        %v1375 = vmul.f32 %v1345, 1.442695
        %v1376 = vpow.pop %v1375
        %v1377 = vmul.f32 %v1346, 1.442695
        %v1378 = vpow.pop %v1377
        %v1379 = vadd.f32 %v1348, %v1350
        %v1380 = vadd.f32 %v1379, %v1352
        %v1381 = vadd.f32 %v1380, %v1354
        %v1382 = vadd.f32 %v1381, %v1356
        %v1383 = vadd.f32 %v1382, %v1358
        %v1384 = vadd.f32 %v1383, %v1360
        %v1385 = vadd.f32 %v1384, %v1362
        %v1386 = vadd.f32 %v1385, %v1364
        %v1387 = vadd.f32 %v1386, %v1366
        %v1388 = vadd.f32 %v1387, %v1368
        %v1389 = vadd.f32 %v1388, %v1370
        %v1390 = vadd.f32 %v1389, %v1372
        %v1391 = vadd.f32 %v1390, %v1374
        %v1392 = vadd.f32 %v1391, %v1376
        %v1393 = vadd.f32 %v1392, %v1378
        %v1394 = vrot.slane %v1393, 4
        %v1395 = vadd.f32 %v1393, %v1394
        %v1396 = vrot.slane %v1395, 2
        %v1397 = vadd.f32 %v1395, %v1396
        %v1398 = vrot.slane %v1397, 1
        %v1399 = vadd.f32 %v1397, %v1398
        %v1400 = vrcp.pop %v1399
        %v1401 = vmul.f32 %v1348, %v1400
        %v1402 = vmul.f32 %v1350, %v1400
        %v1403 = vmul.f32 %v1352, %v1400
        %v1404 = vmul.f32 %v1354, %v1400
        %v1405 = vmul.f32 %v1356, %v1400
        %v1406 = vmul.f32 %v1358, %v1400
        %v1407 = vmul.f32 %v1360, %v1400
        %v1408 = vmul.f32 %v1362, %v1400
        %v1409 = vmul.f32 %v1364, %v1400
        %v1410 = vmul.f32 %v1366, %v1400
        %v1411 = vmul.f32 %v1368, %v1400
        %v1412 = vmul.f32 %v1370, %v1400
        %v1413 = vmul.f32 %v1372, %v1400
        %v1414 = vmul.f32 %v1374, %v1400
        %v1415 = vmul.f32 %v1376, %v1400
        %v1416 = vmul.f32 %v1378, %v1400
        %v1417 = vpack.c.bf16 %v1402, %v1401
        %v1418 = vpack.c.bf16 %v1404, %v1403
        %v1419 = vpack.c.bf16 %v1406, %v1405
        %v1420 = vpack.c.bf16 %v1408, %v1407
        %v1421 = vpack.c.bf16 %v1410, %v1409
        %v1422 = vpack.c.bf16 %v1412, %v1411
        %v1423 = vpack.c.bf16 %v1414, %v1413
        %v1424 = vpack.c.bf16 %v1416, %v1415
        %v1425 = vpack.c.bf16 %v1122, %v1119
        %v1426 = vpack.c.bf16 %v1130, %v1127
        %v1427 = vpack.c.bf16 %v1138, %v1135
        %v1428 = vpack.c.bf16 %v1146, %v1143
        %v1429 = vpack.c.bf16 %v1154, %v1151
        %v1430 = vpack.c.bf16 %v1162, %v1159
        %v1431 = vpack.c.bf16 %v1170, %v1167
        %v1432 = vpack.c.bf16 %v1178, %v1175
        %1433 = vmatprep.subr.bf16.mxu0 0
        %1434 = vmatpush1.bf16.msra.mxu0 %v1432
        %1435 = vmatprep.subr.bf16.mxu0 0
        %1436 = vmatpush1.bf16.msra.mxu0 %v1431
        %1437 = vmatprep.subr.bf16.mxu0 0
        %1438 = vmatpush1.bf16.msra.mxu0 %v1430
        %1439 = vmatprep.subr.bf16.mxu0 0
        %1440 = vmatpush1.bf16.msra.mxu0 %v1429
        %1441 = vmatprep.subr.bf16.mxu0 0
        %1442 = vmatpush1.bf16.msra.mxu0 %v1428
        %1443 = vmatprep.subr.bf16.mxu0 0
        %1444 = vmatpush1.bf16.msra.mxu0 %v1427
        %1445 = vmatprep.subr.bf16.mxu0 0
        %1446 = vmatpush1.bf16.msra.mxu0 %v1426
        %1447 = vmatprep.subr.bf16.mxu0 0
        %1448 = vmatpush1.bf16.msra.mxu0 %v1425
        %1449 = vmatprep.subr.bf16.mxu0 0
        %1450 = vmatpush2.bf16.msra.mxu0 0
        %1451 = vmatprep.subr.bf16.mxu0 0
        %1452 = vmatpush2.bf16.msra.mxu0 0
        %1453 = vmatprep.subr.bf16.mxu0 0
        %1454 = vmatpush2.bf16.msra.mxu0 0
        %1455 = vmatprep.subr.bf16.mxu0 0
        %1456 = vmatpush2.bf16.msra.mxu0 0
        %1457 = vmatprep.subr.bf16.mxu0 0
        %1458 = vmatpush2.bf16.msra.mxu0 0
        %1459 = vmatprep.subr.bf16.mxu0 0
        %1460 = vmatpush2.bf16.msra.mxu0 0
        %1461 = vmatprep.subr.bf16.mxu0 0
        %1462 = vmatpush2.bf16.msra.mxu0 0
        %1463 = vmatprep.subr.bf16.mxu0 0
        %1464 = vmatpush2.bf16.msra.mxu0 0
        %1465 = vmatprep.mubr.bf16.mxu0 0
        %1466 = vmatmul.mubr.bf16.gmra.mxu0 %v1417
        %v1467 = vpop.f32.mrf.mxu0
        %v1468 = vadd.f32 0.0, %v1467
        %v1469 = vpop.f32.mrf.mxu0
        %v1470 = vpop.f32.mrf.mxu0
        %v1471 = vadd.f32 0.0, %v1470
        %v1472 = vpop.f32.mrf.mxu0
        %1473 = vmatprep.mubr.bf16.mxu0 0
        %1474 = vmatmul.mubr.bf16.gmra.mxu0 %v1418
        %v1475 = vpop.f32.mrf.mxu0
        %v1476 = vadd.f32 0.0, %v1475
        %v1477 = vpop.f32.mrf.mxu0
        %v1478 = vpop.f32.mrf.mxu0
        %v1479 = vadd.f32 0.0, %v1478
        %v1480 = vpop.f32.mrf.mxu0
        %1481 = vmatprep.mubr.bf16.mxu0 0
        %1482 = vmatmul.mubr.bf16.gmra.mxu0 %v1419
        %v1483 = vpop.f32.mrf.mxu0
        %v1484 = vadd.f32 0.0, %v1483
        %v1485 = vpop.f32.mrf.mxu0
        %v1486 = vpop.f32.mrf.mxu0
        %v1487 = vadd.f32 0.0, %v1486
        %v1488 = vpop.f32.mrf.mxu0
        %1489 = vmatprep.mubr.bf16.mxu0 0
        %1490 = vmatmul.mubr.bf16.gmra.mxu0 %v1420
        %v1491 = vpop.f32.mrf.mxu0
        %v1492 = vadd.f32 0.0, %v1491
        %v1493 = vpop.f32.mrf.mxu0
        %v1494 = vpop.f32.mrf.mxu0
        %v1495 = vadd.f32 0.0, %v1494
        %v1496 = vpop.f32.mrf.mxu0
        %1497 = vmatprep.mubr.bf16.mxu0 0
        %1498 = vmatmul.mubr.bf16.gmra.mxu0 %v1421
        %v1499 = vpop.f32.mrf.mxu0
        %v1500 = vadd.f32 0.0, %v1499
        %v1501 = vpop.f32.mrf.mxu0
        %v1502 = vpop.f32.mrf.mxu0
        %v1503 = vadd.f32 0.0, %v1502
        %v1504 = vpop.f32.mrf.mxu0
        %1505 = vmatprep.mubr.bf16.mxu0 0
        %1506 = vmatmul.mubr.bf16.gmra.mxu0 %v1422
        %v1507 = vpop.f32.mrf.mxu0
        %v1508 = vadd.f32 0.0, %v1507
        %v1509 = vpop.f32.mrf.mxu0
        %v1510 = vpop.f32.mrf.mxu0
        %v1511 = vadd.f32 0.0, %v1510
        %v1512 = vpop.f32.mrf.mxu0
        %1513 = vmatprep.mubr.bf16.mxu0 0
        %1514 = vmatmul.mubr.bf16.gmra.mxu0 %v1423
        %v1515 = vpop.f32.mrf.mxu0
        %v1516 = vadd.f32 0.0, %v1515
        %v1517 = vpop.f32.mrf.mxu0
        %v1518 = vpop.f32.mrf.mxu0
        %v1519 = vadd.f32 0.0, %v1518
        %v1520 = vpop.f32.mrf.mxu0
        %1521 = vmatprep.mubr.bf16.mxu0 0
        %1522 = vmatmul.mubr.bf16.gmra.mxu0 %v1424
        %v1523 = vpop.f32.mrf.mxu0
        %v1524 = vadd.f32 0.0, %v1523
        %v1525 = vpop.f32.mrf.mxu0
        %v1526 = vpop.f32.mrf.mxu0
        %v1527 = vadd.f32 0.0, %v1526
        %v1528 = vpop.f32.mrf.mxu0
        %1529 = vdwg.mxu0
        %v1530 = vpack.c.bf16 %v1471, %v1468
        %v1531 = vpack.c.bf16 %v1479, %v1476
        %v1532 = vpack.c.bf16 %v1487, %v1484
        %v1533 = vpack.c.bf16 %v1495, %v1492
        %v1534 = vpack.c.bf16 %v1503, %v1500
        %v1535 = vpack.c.bf16 %v1511, %v1508
        %v1536 = vpack.c.bf16 %v1519, %v1516
        %v1537 = vpack.c.bf16 %v1527, %v1524
        %v1538 = vld [vmem:[%s362] sm:$0xff]
        %v1539 = vld [vmem:[%s362 + $0x8] sm:$0xff]
        %v1540 = vld [vmem:[%s362 + $0x10] sm:$0xff]
        %v1541 = vld [vmem:[%s362 + $0x18] sm:$0xff]
        %v1542 = vld [vmem:[%s362 + $0x20] sm:$0xff]
        %v1543 = vld [vmem:[%s362 + $0x28] sm:$0xff]
        %v1544 = vld [vmem:[%s362 + $0x30] sm:$0xff]
        %v1545 = vld [vmem:[%s362 + $0x38] sm:$0xff]
        %v1546 = vld [vmem:[%s362 + $0x40] sm:$0xff]
        %v1547 = vld [vmem:[%s362 + $0x48] sm:$0xff]
        %v1548 = vld [vmem:[%s362 + $0x50] sm:$0xff]
        %v1549 = vld [vmem:[%s362 + $0x58] sm:$0xff]
        %v1550 = vld [vmem:[%s362 + $0x60] sm:$0xff]
        %v1551 = vld [vmem:[%s362 + $0x68] sm:$0xff]
        %v1552 = vld [vmem:[%s362 + $0x70] sm:$0xff]
        %v1553 = vld [vmem:[%s362 + $0x78] sm:$0xff]
        %v1570 = vunpack.c.l.b16 %v1538
        %v1571 = vunpack.c.h.b16 %v1538
        %v1572 = vunpack.c.l.b16 %v1539
        %v1573 = vunpack.c.h.b16 %v1539
        %v1574 = vunpack.c.l.b16 %v1540
        %v1575 = vunpack.c.h.b16 %v1540
        %v1576 = vunpack.c.l.b16 %v1541
        %v1577 = vunpack.c.h.b16 %v1541
        %v1578 = vunpack.c.l.b16 %v1542
        %v1579 = vunpack.c.h.b16 %v1542
        %v1580 = vunpack.c.l.b16 %v1543
        %v1581 = vunpack.c.h.b16 %v1543
        %v1582 = vunpack.c.l.b16 %v1544
        %v1583 = vunpack.c.h.b16 %v1544
        %v1584 = vunpack.c.l.b16 %v1545
        %v1585 = vunpack.c.h.b16 %v1545
        %v1586 = vunpack.c.l.b16 %v1546
        %v1587 = vunpack.c.h.b16 %v1546
        %v1588 = vunpack.c.l.b16 %v1547
        %v1589 = vunpack.c.h.b16 %v1547
        %v1590 = vunpack.c.l.b16 %v1548
        %v1591 = vunpack.c.h.b16 %v1548
        %v1592 = vunpack.c.l.b16 %v1549
        %v1593 = vunpack.c.h.b16 %v1549
        %v1594 = vunpack.c.l.b16 %v1550
        %v1595 = vunpack.c.h.b16 %v1550
        %v1596 = vunpack.c.l.b16 %v1551
        %v1597 = vunpack.c.h.b16 %v1551
        %v1598 = vunpack.c.l.b16 %v1552
        %v1599 = vunpack.c.h.b16 %v1552
        %v1600 = vunpack.c.l.b16 %v1553
        %v1601 = vunpack.c.h.b16 %v1553
        %v1602 = vpack.c.b16 %v1572, %v1570
        %v1603 = vpack.c.b16 %v1573, %v1571
        %v1604 = vpack.c.b16 %v1576, %v1574
        %v1605 = vpack.c.b16 %v1577, %v1575
        %v1606 = vpack.c.b16 %v1580, %v1578
        %v1607 = vpack.c.b16 %v1581, %v1579
        %v1608 = vpack.c.b16 %v1584, %v1582
        %v1609 = vpack.c.b16 %v1585, %v1583
        %v1610 = vpack.c.b16 %v1588, %v1586
        %v1611 = vpack.c.b16 %v1589, %v1587
        %v1612 = vpack.c.b16 %v1592, %v1590
        %v1613 = vpack.c.b16 %v1593, %v1591
        %v1614 = vpack.c.b16 %v1596, %v1594
        %v1615 = vpack.c.b16 %v1597, %v1595
        %v1616 = vpack.c.b16 %v1600, %v1598
        %v1617 = vpack.c.b16 %v1601, %v1599
        %1634 = vmatprep.subr.bf16.mxu0 %v1617
        %1635 = vmatpush1.bf16.msra.mxu0 %v1616
        %1636 = vmatprep.subr.bf16.mxu0 %v1615
        %1637 = vmatpush1.bf16.msra.mxu0 %v1614
        %1638 = vmatprep.subr.bf16.mxu0 %v1613
        %1639 = vmatpush1.bf16.msra.mxu0 %v1612
        %1640 = vmatprep.subr.bf16.mxu0 %v1611
        %1641 = vmatpush1.bf16.msra.mxu0 %v1610
        %1642 = vmatprep.subr.bf16.mxu0 %v1609
        %1643 = vmatpush1.bf16.msra.mxu0 %v1608
        %1644 = vmatprep.subr.bf16.mxu0 %v1607
        %1645 = vmatpush1.bf16.msra.mxu0 %v1606
        %1646 = vmatprep.subr.bf16.mxu0 %v1605
        %1647 = vmatpush1.bf16.msra.mxu0 %v1604
        %1648 = vmatprep.subr.bf16.mxu0 %v1603
        %1649 = vmatpush1.bf16.msra.mxu0 %v1602
        %1650 = vmatprep.subr.bf16.mxu0 0
        %1651 = vmatpush2.bf16.msra.mxu0 0
        %1652 = vmatprep.subr.bf16.mxu0 0
        %1653 = vmatpush2.bf16.msra.mxu0 0
        %1654 = vmatprep.subr.bf16.mxu0 0
        %1655 = vmatpush2.bf16.msra.mxu0 0
        %1656 = vmatprep.subr.bf16.mxu0 0
        %1657 = vmatpush2.bf16.msra.mxu0 0
        %1658 = vmatprep.subr.bf16.mxu0 0
        %1659 = vmatpush2.bf16.msra.mxu0 0
        %1660 = vmatprep.subr.bf16.mxu0 0
        %1661 = vmatpush2.bf16.msra.mxu0 0
        %1662 = vmatprep.subr.bf16.mxu0 0
        %1663 = vmatpush2.bf16.msra.mxu0 0
        %1664 = vmatprep.subr.bf16.mxu0 0
        %1665 = vmatpush2.bf16.msra.mxu0 0
        %1666 = vmatprep.mubr.bf16.mxu0 0
        %1667 = vmatmul.mubr.bf16.gmra.mxu0 %v1530
        %v1668 = vpop.f32.mrf.mxu0
        %v1669 = vadd.f32 0.0, %v1668
        %v1670 = vpop.f32.mrf.mxu0
        %v1671 = vadd.f32 0.0, %v1670
        %v1672 = vpop.f32.mrf.mxu0
        %v1673 = vadd.f32 0.0, %v1672
        %v1674 = vpop.f32.mrf.mxu0
        %v1675 = vadd.f32 0.0, %v1674
        %1676 = vmatprep.mubr.bf16.mxu0 0
        %1677 = vmatmul.mubr.bf16.gmra.mxu0 %v1531
        %v1678 = vpop.f32.mrf.mxu0
        %v1679 = vadd.f32 0.0, %v1678
        %v1680 = vpop.f32.mrf.mxu0
        %v1681 = vadd.f32 0.0, %v1680
        %v1682 = vpop.f32.mrf.mxu0
        %v1683 = vadd.f32 0.0, %v1682
        %v1684 = vpop.f32.mrf.mxu0
        %v1685 = vadd.f32 0.0, %v1684
        %1686 = vmatprep.mubr.bf16.mxu0 0
        %1687 = vmatmul.mubr.bf16.gmra.mxu0 %v1532
        %v1688 = vpop.f32.mrf.mxu0
        %v1689 = vadd.f32 0.0, %v1688
        %v1690 = vpop.f32.mrf.mxu0
        %v1691 = vadd.f32 0.0, %v1690
        %v1692 = vpop.f32.mrf.mxu0
        %v1693 = vadd.f32 0.0, %v1692
        %v1694 = vpop.f32.mrf.mxu0
        %v1695 = vadd.f32 0.0, %v1694
        %1696 = vmatprep.mubr.bf16.mxu0 0
        %1697 = vmatmul.mubr.bf16.gmra.mxu0 %v1533
        %v1698 = vpop.f32.mrf.mxu0
        %v1699 = vadd.f32 0.0, %v1698
        %v1700 = vpop.f32.mrf.mxu0
        %v1701 = vadd.f32 0.0, %v1700
        %v1702 = vpop.f32.mrf.mxu0
        %v1703 = vadd.f32 0.0, %v1702
        %v1704 = vpop.f32.mrf.mxu0
        %v1705 = vadd.f32 0.0, %v1704
        %1706 = vmatprep.mubr.bf16.mxu0 0
        %1707 = vmatmul.mubr.bf16.gmra.mxu0 %v1534
        %v1708 = vpop.f32.mrf.mxu0
        %v1709 = vadd.f32 0.0, %v1708
        %v1710 = vpop.f32.mrf.mxu0
        %v1711 = vadd.f32 0.0, %v1710
        %v1712 = vpop.f32.mrf.mxu0
        %v1713 = vadd.f32 0.0, %v1712
        %v1714 = vpop.f32.mrf.mxu0
        %v1715 = vadd.f32 0.0, %v1714
        %1716 = vmatprep.mubr.bf16.mxu0 0
        %1717 = vmatmul.mubr.bf16.gmra.mxu0 %v1535
        %v1718 = vpop.f32.mrf.mxu0
        %v1719 = vadd.f32 0.0, %v1718
        %v1720 = vpop.f32.mrf.mxu0
        %v1721 = vadd.f32 0.0, %v1720
        %v1722 = vpop.f32.mrf.mxu0
        %v1723 = vadd.f32 0.0, %v1722
        %v1724 = vpop.f32.mrf.mxu0
        %v1725 = vadd.f32 0.0, %v1724
        %1726 = vmatprep.mubr.bf16.mxu0 0
        %1727 = vmatmul.mubr.bf16.gmra.mxu0 %v1536
        %v1728 = vpop.f32.mrf.mxu0
        %v1729 = vadd.f32 0.0, %v1728
        %v1730 = vpop.f32.mrf.mxu0
        %v1731 = vadd.f32 0.0, %v1730
        %v1732 = vpop.f32.mrf.mxu0
        %v1733 = vadd.f32 0.0, %v1732
        %v1734 = vpop.f32.mrf.mxu0
        %v1735 = vadd.f32 0.0, %v1734
        %1736 = vmatprep.mubr.bf16.mxu0 0
        %1737 = vmatmul.mubr.bf16.gmra.mxu0 %v1537
        %v1738 = vpop.f32.mrf.mxu0
        %v1739 = vadd.f32 0.0, %v1738
        %v1740 = vpop.f32.mrf.mxu0
        %v1741 = vadd.f32 0.0, %v1740
        %v1742 = vpop.f32.mrf.mxu0
        %v1743 = vadd.f32 0.0, %v1742
        %v1744 = vpop.f32.mrf.mxu0
        %v1745 = vadd.f32 0.0, %v1744
        %1746 = vdwg.mxu0
        %p1747 = scmp.eq.s32.totalorder %s33, 0
        // Predicated region
        $region61: #{tpu_custom_call.1} parent=39 // pred_check
          %p1748 = pneg %p1747
        $region62: #{tpu_custom_call.1} parent=39 // pred_check_branch
          %1750 = sbr.rel (%p1748) target = $region64
        $region63: #{tpu_custom_call.1} parent=39 // pred_region
          %1751 = vst [vmem:[#allocation2] sm:$0xff] 0.0
          %1752 = vst [vmem:[#allocation2 + $0x8] sm:$0xff] 0.0
          %1753 = vst [vmem:[#allocation2 + $0x10] sm:$0xff] 0.0
          %1754 = vst [vmem:[#allocation2 + $0x18] sm:$0xff] 0.0
          %1755 = vst [vmem:[#allocation2 + $0x20] sm:$0xff] 0.0
          %1756 = vst [vmem:[#allocation2 + $0x28] sm:$0xff] 0.0
          %1757 = vst [vmem:[#allocation2 + $0x30] sm:$0xff] 0.0
          %1758 = vst [vmem:[#allocation2 + $0x38] sm:$0xff] 0.0
          %1759 = vst [vmem:[#allocation2 + $0x40] sm:$0xff] 0.0
          %1760 = vst [vmem:[#allocation2 + $0x48] sm:$0xff] 0.0
          %1761 = vst [vmem:[#allocation2 + $0x50] sm:$0xff] 0.0
          %1762 = vst [vmem:[#allocation2 + $0x58] sm:$0xff] 0.0
          %1763 = vst [vmem:[#allocation2 + $0x60] sm:$0xff] 0.0
          %1764 = vst [vmem:[#allocation2 + $0x68] sm:$0xff] 0.0
          %1765 = vst [vmem:[#allocation2 + $0x70] sm:$0xff] 0.0
          %1766 = vst [vmem:[#allocation2 + $0x78] sm:$0xff] 0.0
          %1767 = vst [vmem:[#allocation2 + $0x80] sm:$0xff] 0.0
          %1768 = vst [vmem:[#allocation2 + $0x88] sm:$0xff] 0.0
          %1769 = vst [vmem:[#allocation2 + $0x90] sm:$0xff] 0.0
          %1770 = vst [vmem:[#allocation2 + $0x98] sm:$0xff] 0.0
          %1771 = vst [vmem:[#allocation2 + $0xa0] sm:$0xff] 0.0
          %1772 = vst [vmem:[#allocation2 + $0xa8] sm:$0xff] 0.0
          %1773 = vst [vmem:[#allocation2 + $0xb0] sm:$0xff] 0.0
          %1774 = vst [vmem:[#allocation2 + $0xb8] sm:$0xff] 0.0
          %1775 = vst [vmem:[#allocation2 + $0xc0] sm:$0xff] 0.0
          %1776 = vst [vmem:[#allocation2 + $0xc8] sm:$0xff] 0.0
          %1777 = vst [vmem:[#allocation2 + $0xd0] sm:$0xff] 0.0
          %1778 = vst [vmem:[#allocation2 + $0xd8] sm:$0xff] 0.0
          %1779 = vst [vmem:[#allocation2 + $0xe0] sm:$0xff] 0.0
          %1780 = vst [vmem:[#allocation2 + $0xe8] sm:$0xff] 0.0
          %1781 = vst [vmem:[#allocation2 + $0xf0] sm:$0xff] 0.0
          %1782 = vst [vmem:[#allocation2 + $0xf8] sm:$0xff] 0.0
        $region64: #{tpu_custom_call.1} parent=39 // pred_fallthru
          _
        %v1783 = vld [vmem:[#allocation2] sm:$0xff]
        %v1784 = vld [vmem:[#allocation2 + $0x8] sm:$0xff]
        %v1785 = vld [vmem:[#allocation2 + $0x10] sm:$0xff]
        %v1786 = vld [vmem:[#allocation2 + $0x18] sm:$0xff]
        %v1787 = vld [vmem:[#allocation2 + $0x20] sm:$0xff]
        %v1788 = vld [vmem:[#allocation2 + $0x28] sm:$0xff]
        %v1789 = vld [vmem:[#allocation2 + $0x30] sm:$0xff]
        %v1790 = vld [vmem:[#allocation2 + $0x38] sm:$0xff]
        %v1791 = vld [vmem:[#allocation2 + $0x40] sm:$0xff]
        %v1792 = vld [vmem:[#allocation2 + $0x48] sm:$0xff]
        %v1793 = vld [vmem:[#allocation2 + $0x50] sm:$0xff]
        %v1794 = vld [vmem:[#allocation2 + $0x58] sm:$0xff]
        %v1795 = vld [vmem:[#allocation2 + $0x60] sm:$0xff]
        %v1796 = vld [vmem:[#allocation2 + $0x68] sm:$0xff]
        %v1797 = vld [vmem:[#allocation2 + $0x70] sm:$0xff]
        %v1798 = vld [vmem:[#allocation2 + $0x78] sm:$0xff]
        %v1799 = vld [vmem:[#allocation2 + $0x80] sm:$0xff]
        %v1800 = vld [vmem:[#allocation2 + $0x88] sm:$0xff]
        %v1801 = vld [vmem:[#allocation2 + $0x90] sm:$0xff]
        %v1802 = vld [vmem:[#allocation2 + $0x98] sm:$0xff]
        %v1803 = vld [vmem:[#allocation2 + $0xa0] sm:$0xff]
        %v1804 = vld [vmem:[#allocation2 + $0xa8] sm:$0xff]
        %v1805 = vld [vmem:[#allocation2 + $0xb0] sm:$0xff]
        %v1806 = vld [vmem:[#allocation2 + $0xb8] sm:$0xff]
        %v1807 = vld [vmem:[#allocation2 + $0xc0] sm:$0xff]
        %v1808 = vld [vmem:[#allocation2 + $0xc8] sm:$0xff]
        %v1809 = vld [vmem:[#allocation2 + $0xd0] sm:$0xff]
        %v1810 = vld [vmem:[#allocation2 + $0xd8] sm:$0xff]
        %v1811 = vld [vmem:[#allocation2 + $0xe0] sm:$0xff]
        %v1812 = vld [vmem:[#allocation2 + $0xe8] sm:$0xff]
        %v1813 = vld [vmem:[#allocation2 + $0xf0] sm:$0xff]
        %v1814 = vld [vmem:[#allocation2 + $0xf8] sm:$0xff]
        %v1815 = vadd.f32 %v1783, %v1669
        %v1816 = vadd.f32 %v1784, %v1671
        %v1817 = vadd.f32 %v1785, %v1673
        %v1818 = vadd.f32 %v1786, %v1675
        %v1819 = vadd.f32 %v1787, %v1679
        %v1820 = vadd.f32 %v1788, %v1681
        %v1821 = vadd.f32 %v1789, %v1683
        %v1822 = vadd.f32 %v1790, %v1685
        %v1823 = vadd.f32 %v1791, %v1689
        %v1824 = vadd.f32 %v1792, %v1691
        %v1825 = vadd.f32 %v1793, %v1693
        %v1826 = vadd.f32 %v1794, %v1695
        %v1827 = vadd.f32 %v1795, %v1699
        %v1828 = vadd.f32 %v1796, %v1701
        %v1829 = vadd.f32 %v1797, %v1703
        %v1830 = vadd.f32 %v1798, %v1705
        %v1831 = vadd.f32 %v1799, %v1709
        %v1832 = vadd.f32 %v1800, %v1711
        %v1833 = vadd.f32 %v1801, %v1713
        %v1834 = vadd.f32 %v1802, %v1715
        %v1835 = vadd.f32 %v1803, %v1719
        %v1836 = vadd.f32 %v1804, %v1721
        %v1837 = vadd.f32 %v1805, %v1723
        %v1838 = vadd.f32 %v1806, %v1725
        %v1839 = vadd.f32 %v1807, %v1729
        %v1840 = vadd.f32 %v1808, %v1731
        %v1841 = vadd.f32 %v1809, %v1733
        %v1842 = vadd.f32 %v1810, %v1735
        %v1843 = vadd.f32 %v1811, %v1739
        %v1844 = vadd.f32 %v1812, %v1741
        %v1845 = vadd.f32 %v1813, %v1743
        %v1846 = vadd.f32 %v1814, %v1745
        %1847 = vst [vmem:[#allocation2] sm:$0xff] %v1815
        %1848 = vst [vmem:[#allocation2 + $0x8] sm:$0xff] %v1816
        %1849 = vst [vmem:[#allocation2 + $0x10] sm:$0xff] %v1817
        %1850 = vst [vmem:[#allocation2 + $0x18] sm:$0xff] %v1818
        %1851 = vst [vmem:[#allocation2 + $0x20] sm:$0xff] %v1819
        %1852 = vst [vmem:[#allocation2 + $0x28] sm:$0xff] %v1820
        %1853 = vst [vmem:[#allocation2 + $0x30] sm:$0xff] %v1821
        %1854 = vst [vmem:[#allocation2 + $0x38] sm:$0xff] %v1822
        %1855 = vst [vmem:[#allocation2 + $0x40] sm:$0xff] %v1823
        %1856 = vst [vmem:[#allocation2 + $0x48] sm:$0xff] %v1824
        %1857 = vst [vmem:[#allocation2 + $0x50] sm:$0xff] %v1825
        %1858 = vst [vmem:[#allocation2 + $0x58] sm:$0xff] %v1826
        %1859 = vst [vmem:[#allocation2 + $0x60] sm:$0xff] %v1827
        %1860 = vst [vmem:[#allocation2 + $0x68] sm:$0xff] %v1828
        %1861 = vst [vmem:[#allocation2 + $0x70] sm:$0xff] %v1829
        %1862 = vst [vmem:[#allocation2 + $0x78] sm:$0xff] %v1830
        %1863 = vst [vmem:[#allocation2 + $0x80] sm:$0xff] %v1831
        %1864 = vst [vmem:[#allocation2 + $0x88] sm:$0xff] %v1832
        %1865 = vst [vmem:[#allocation2 + $0x90] sm:$0xff] %v1833
        %1866 = vst [vmem:[#allocation2 + $0x98] sm:$0xff] %v1834
        %1867 = vst [vmem:[#allocation2 + $0xa0] sm:$0xff] %v1835
        %1868 = vst [vmem:[#allocation2 + $0xa8] sm:$0xff] %v1836
        %1869 = vst [vmem:[#allocation2 + $0xb0] sm:$0xff] %v1837
        %1870 = vst [vmem:[#allocation2 + $0xb8] sm:$0xff] %v1838
        %1871 = vst [vmem:[#allocation2 + $0xc0] sm:$0xff] %v1839
        %1872 = vst [vmem:[#allocation2 + $0xc8] sm:$0xff] %v1840
        %1873 = vst [vmem:[#allocation2 + $0xd0] sm:$0xff] %v1841
        %1874 = vst [vmem:[#allocation2 + $0xd8] sm:$0xff] %v1842
        %1875 = vst [vmem:[#allocation2 + $0xe0] sm:$0xff] %v1843
        %1876 = vst [vmem:[#allocation2 + $0xe8] sm:$0xff] %v1844
        %1877 = vst [vmem:[#allocation2 + $0xf0] sm:$0xff] %v1845
        %1878 = vst [vmem:[#allocation2 + $0xf8] sm:$0xff] %v1846
        %p1879 = scmp.eq.s32.totalorder %s33, 1
        // Predicated region
        $region65: #{tpu_custom_call.1} parent=39 // pred_check
          %p1880 = pneg %p1879
        $region66: #{tpu_custom_call.1} parent=39 // pred_check_branch
          %1882 = sbr.rel (%p1880) target = $region68
        $region67: #{tpu_custom_call.1} parent=39 // pred_region
          %v1883 = vld [vmem:[#allocation2] sm:$0xff]
          %v1884 = vld [vmem:[#allocation2 + $0x8] sm:$0xff]
          %v1885 = vld [vmem:[#allocation2 + $0x10] sm:$0xff]
          %v1886 = vld [vmem:[#allocation2 + $0x18] sm:$0xff]
          %v1887 = vld [vmem:[#allocation2 + $0x20] sm:$0xff]
          %v1888 = vld [vmem:[#allocation2 + $0x28] sm:$0xff]
          %v1889 = vld [vmem:[#allocation2 + $0x30] sm:$0xff]
          %v1890 = vld [vmem:[#allocation2 + $0x38] sm:$0xff]
          %v1891 = vld [vmem:[#allocation2 + $0x40] sm:$0xff]
          %v1892 = vld [vmem:[#allocation2 + $0x48] sm:$0xff]
          %v1893 = vld [vmem:[#allocation2 + $0x50] sm:$0xff]
          %v1894 = vld [vmem:[#allocation2 + $0x58] sm:$0xff]
          %v1895 = vld [vmem:[#allocation2 + $0x60] sm:$0xff]
          %v1896 = vld [vmem:[#allocation2 + $0x68] sm:$0xff]
          %v1897 = vld [vmem:[#allocation2 + $0x70] sm:$0xff]
          %v1898 = vld [vmem:[#allocation2 + $0x78] sm:$0xff]
          %v1899 = vld [vmem:[#allocation2 + $0x80] sm:$0xff]
          %v1900 = vld [vmem:[#allocation2 + $0x88] sm:$0xff]
          %v1901 = vld [vmem:[#allocation2 + $0x90] sm:$0xff]
          %v1902 = vld [vmem:[#allocation2 + $0x98] sm:$0xff]
          %v1903 = vld [vmem:[#allocation2 + $0xa0] sm:$0xff]
          %v1904 = vld [vmem:[#allocation2 + $0xa8] sm:$0xff]
          %v1905 = vld [vmem:[#allocation2 + $0xb0] sm:$0xff]
          %v1906 = vld [vmem:[#allocation2 + $0xb8] sm:$0xff]
          %v1907 = vld [vmem:[#allocation2 + $0xc0] sm:$0xff]
          %v1908 = vld [vmem:[#allocation2 + $0xc8] sm:$0xff]
          %v1909 = vld [vmem:[#allocation2 + $0xd0] sm:$0xff]
          %v1910 = vld [vmem:[#allocation2 + $0xd8] sm:$0xff]
          %v1911 = vld [vmem:[#allocation2 + $0xe0] sm:$0xff]
          %v1912 = vld [vmem:[#allocation2 + $0xe8] sm:$0xff]
          %v1913 = vld [vmem:[#allocation2 + $0xf0] sm:$0xff]
          %v1914 = vld [vmem:[#allocation2 + $0xf8] sm:$0xff]
          %1915 = vst [vmem:[%s408] sm:$0xff] %v1883
          %1916 = vst [vmem:[%s408 + $0x8] sm:$0xff] %v1884
          %1917 = vst [vmem:[%s408 + $0x10] sm:$0xff] %v1885
          %1918 = vst [vmem:[%s408 + $0x18] sm:$0xff] %v1886
          %1919 = vst [vmem:[%s408 + $0x20] sm:$0xff] %v1887
          %1920 = vst [vmem:[%s408 + $0x28] sm:$0xff] %v1888
          %1921 = vst [vmem:[%s408 + $0x30] sm:$0xff] %v1889
          %1922 = vst [vmem:[%s408 + $0x38] sm:$0xff] %v1890
          %1923 = vst [vmem:[%s408 + $0x40] sm:$0xff] %v1891
          %1924 = vst [vmem:[%s408 + $0x48] sm:$0xff] %v1892
          %1925 = vst [vmem:[%s408 + $0x50] sm:$0xff] %v1893
          %1926 = vst [vmem:[%s408 + $0x58] sm:$0xff] %v1894
          %1927 = vst [vmem:[%s408 + $0x60] sm:$0xff] %v1895
          %1928 = vst [vmem:[%s408 + $0x68] sm:$0xff] %v1896
          %1929 = vst [vmem:[%s408 + $0x70] sm:$0xff] %v1897
          %1930 = vst [vmem:[%s408 + $0x78] sm:$0xff] %v1898
          %1931 = vst [vmem:[%s408 + $0x80] sm:$0xff] %v1899
          %1932 = vst [vmem:[%s408 + $0x88] sm:$0xff] %v1900
          %1933 = vst [vmem:[%s408 + $0x90] sm:$0xff] %v1901
          %1934 = vst [vmem:[%s408 + $0x98] sm:$0xff] %v1902
          %1935 = vst [vmem:[%s408 + $0xa0] sm:$0xff] %v1903
          %1936 = vst [vmem:[%s408 + $0xa8] sm:$0xff] %v1904
          %1937 = vst [vmem:[%s408 + $0xb0] sm:$0xff] %v1905
          %1938 = vst [vmem:[%s408 + $0xb8] sm:$0xff] %v1906
          %1939 = vst [vmem:[%s408 + $0xc0] sm:$0xff] %v1907
          %1940 = vst [vmem:[%s408 + $0xc8] sm:$0xff] %v1908
          %1941 = vst [vmem:[%s408 + $0xd0] sm:$0xff] %v1909
          %1942 = vst [vmem:[%s408 + $0xd8] sm:$0xff] %v1910
          %1943 = vst [vmem:[%s408 + $0xe0] sm:$0xff] %v1911
          %1944 = vst [vmem:[%s408 + $0xe8] sm:$0xff] %v1912
          %1945 = vst [vmem:[%s408 + $0xf0] sm:$0xff] %v1913
          %1946 = vst [vmem:[%s408 + $0xf8] sm:$0xff] %v1914
        $region68: #{tpu_custom_call.1} parent=39 // pred_fallthru
          _
        %s1947 = sand.u32 %s178, 1
        %s1948 = scalar_lea.sflag [#allocation5], %s1947
        %s1949 = sand.u32 %s178, 1
        %s1950 = smul.addr %s1949, 256
        %s1951 = scalar_lea.vmem [#allocation12], %s1950
        // Predicated region
        $region69: #{tpu_custom_call.1} parent=39 // pred_check
          %p1952 = pneg %p188
        $region70: #{tpu_custom_call.1} parent=39 // pred_check_branch
          %1954 = sbr.rel (%p1952) target = $region72
        $region71: #{tpu_custom_call.1} parent=39 // pred_region
          %s1956 = ssub.s32 4096, 4096
          %1957 = vsyncadd %s1948, %s1956
          %s1958 = smul.addr %s32, 32
          %s1959 = smul.addr %s1958, 128
          %s1960 = scalar_lea.hbm %s5, %s1959
          %s1961 = sshll.u32 %s1951, 4
          %s1962 = int_to_ptr.vmem [resolvable:$true] %s1961
          %1967 = dma.vmem_to_hbm [thread:$0]  %s1962, 4096, %s1960, %s1948, 256, 256, 16
        $region72: #{tpu_custom_call.1} parent=39 // pred_fallthru
          _
      $region40: #{tpu_custom_call.1} parent=5 // pred_fallthru
        _
      %p1968 = scmp.le.s32.totalorder 2, %s23
      // Predicated region
      $region73: #{tpu_custom_call.1} parent=5 // pred_check
        %p1969 = pneg %p1968
      $region74: #{tpu_custom_call.1} parent=5 // pred_check_branch
        %1971 = sbr.rel (%p1969) target = $region76
      $region75: #{tpu_custom_call.1} parent=5 // pred_region
        %s1972 = ssub.s32 %s23, 2
        // Predicated region
        $region77: #{tpu_custom_call.1} parent=75 // pred_check
          %p1973 = pneg %p194
        $region78: #{tpu_custom_call.1} parent=75 // pred_check_branch
          %1975 = sbr.rel (%p1973) target = $region80
        $region79: #{tpu_custom_call.1} parent=75 // pred_region
          %s1976 = sand.u32 %s179, 1
          %s1977 = scalar_lea.sflag [#allocation5], %s1976
          %s1978 = sand.u32 %s179, 1
          %s1979 = smul.addr %s1978, 256
          %s1980 = scalar_lea.vmem [#allocation12], %s1979
          %1981 = dma.done %s1977, 4096
        $region80: #{tpu_custom_call.1} parent=75 // pred_fallthru
          _
      $region76: #{tpu_custom_call.1} parent=5 // pred_fallthru
        _
    $region6: #{tpu_custom_call.1} parent=1 // loop_footer
      %s27 = sadd.s32 1, %s23
    $region7: #{tpu_custom_call.1} parent=1 // loop_footer_branch
      %22 = sbr.rel target = $region3
    $region8: #{tpu_custom_call.1} parent=1 // loop_exit
      _
    %1982 = vsyncpa [#allocation4], 1
    %s1983 = scalar_lea.sflag [#allocation4], 1
    %1984 = vsyncpa %s1983, 1
    %1985 = vsyncpa [#allocation7], 1
    %s1986 = scalar_lea.sflag [#allocation7], 1
    %1987 = vsyncpa %s1986, 1
    %1988 = vsyncpa [#allocation10], 1
    %s1989 = scalar_lea.sflag [#allocation10], 1
    %1990 = vsyncpa %s1989, 1
    %1991 = vsyncpa [#allocation5], 1
    %s1992 = scalar_lea.sflag [#allocation5], 1
    %1993 = vsyncpa %s1992, 1

</llo_original>
